<compile_context>
chip_gen: v7x
topology: tpu7x:2x2x1
jax: 0.10.0
libtpu: 0.0.40
codegen_flags: <defaults>
</compile_context>

<pallas_src>
import math
import functools

import jax
import jax.numpy as jnp
from jax.experimental import pallas as pl
from jax.experimental.pallas import tpu as pltpu

DIM = 32
NUM_HEADS = 4
HEAD_DIM = DIM // NUM_HEADS
FF_HIDDEN = 4 * DIM
EPS = 1e-5
LEAKY_SLOPE = 0.3


def _layernorm(x, w, b):
    # Biased variance (matches PyTorch nn.LayerNorm).
    mean = jnp.mean(x, axis=-1, keepdims=True)
    var = jnp.mean((x - mean) ** 2, axis=-1, keepdims=True)
    return (x - mean) * jax.lax.rsqrt(var + EPS) * w + b


def sab_kernel(
    x_ref,          # (tb*n, D)   activations for this batch tile
    vec_ref,        # (6, D)      [ln1_w, ln1_b, ln2_w, ln2_b, bo, b2]
    wqkv_ref,       # (D, 3D)     fused QKV weight (x @ W form)
    bqkv_ref,       # (1, 3D)
    wo_ref,         # (D, D)
    w1_ref,         # (D, FF)
    b1_ref,         # (1, FF)
    w2_ref,         # (FF, D)
    o_ref,          # (tb*n, D)
    *, tb, n,
):
    rows = tb * n
    x = x_ref[...]                                   # (rows, D)

    vec = vec_ref[...]
    ln1w, ln1b = vec[0:1], vec[1:2]
    ln2w, ln2b = vec[2:3], vec[3:4]
    bo, b2 = vec[4:5], vec[5:6]

    # ---- LayerNorm 1 ----
    xn = _layernorm(x, ln1w, ln1b)

    # ---- fused QKV projection (one MXU push instead of three) ----
    qkv = jnp.dot(xn, wqkv_ref[...], preferred_element_type=jnp.float32) + bqkv_ref[...]
    # Leading-dim split only (lane dim preserved) -> layout-compatible reshape.
    q3 = qkv[:, 0 * DIM:1 * DIM].reshape(tb, n, DIM)
    k3 = qkv[:, 1 * DIM:2 * DIM].reshape(tb, n, DIM)
    v3 = qkv[:, 2 * DIM:3 * DIM].reshape(tb, n, DIM)

    # ---- multi-head self-attention ----
    # Heads unroll at trace time; each head's contractions are batched over
    # the tb batch elements with a single-batch-dim einsum.  The output
    # projection is distributed per head so no lane-axis concatenate is
    # needed:  attn @ Wo == sum_h  o_h @ Wo[h*hd:(h+1)*hd, :].
    scale = 1.0 / math.sqrt(HEAD_DIM)
    attn = jnp.zeros((rows, DIM), jnp.float32)
    for h in range(NUM_HEADS):
        lo, hi = h * HEAD_DIM, (h + 1) * HEAD_DIM
        qh = q3[:, :, lo:hi]                          # (tb, n, hd)
        kh = k3[:, :, lo:hi]
        vh = v3[:, :, lo:hi]
        s = jnp.einsum("bqd,bkd->bqk", qh, kh,
                       preferred_element_type=jnp.float32) * scale
        s = s - jnp.max(s, axis=-1, keepdims=True)
        p = jnp.exp(s)
        p = p * pl.reciprocal(jnp.sum(p, axis=-1, keepdims=True), approx=True)
        oh = jnp.einsum("bqk,bkd->bqd", p, vh,
                        preferred_element_type=jnp.float32)       # (tb, n, hd)
        oh2 = oh.reshape(rows, HEAD_DIM)              # leading-dim merge only
        attn = attn + jnp.dot(oh2, wo_ref[lo:hi, :],
                              preferred_element_type=jnp.float32)
    attn = attn + bo

    # ---- residual 1 + LayerNorm 2 ----
    x1 = x + attn
    xn2 = _layernorm(x1, ln2w, ln2b)

    # ---- FFN: Linear -> LeakyReLU(0.3) -> Linear ----
    h1 = jnp.dot(xn2, w1_ref[...], preferred_element_type=jnp.float32) + b1_ref[...]
    h1 = jnp.where(h1 > 0, h1, LEAKY_SLOPE * h1)
    ff = jnp.dot(h1, w2_ref[...], preferred_element_type=jnp.float32) + b2

    # ---- residual 2 ----
    o_ref[...] = (x1 + ff).astype(o_ref.dtype)


def _choose_batch_tile(batch, n, target_rows=512):
    """Largest-needed batch tile: tb divides batch, tb*n >= target_rows when
    possible, and tb*n stays sublane-aligned (multiple of 8) unless tb == batch
    (block == full array is always legal)."""
    for d in range(1, batch + 1):
        if batch % d:
            continue
        rows = d * n
        if rows >= target_rows and (rows % 8 == 0 or d == batch):
            return d
    return batch


def sab_forward(x, params):
    B, N, D = x.shape
    assert D == DIM

    tb = _choose_batch_tile(B, N)
    grid = B // tb
    rows = tb * N

    # Flatten batch/set dims in the wrapper (free) so the kernel works on a
    # lane-dense (rows, D) slab and the grid tiles many rows per step.
    x2 = x.reshape(B * N, D)

    weights = [
        params["vecs"],      # (6, D)
        params["wqkv"],      # (D, 3D)
        params["bqkv"],      # (1, 3D)
        params["wo"],        # (D, D)
        params["w1"],        # (D, FF)
        params["b1"],        # (1, FF)
        params["w2"],        # (FF, D)
    ]

    def wspec(shape):
        return pl.BlockSpec(shape, lambda i, _r=len(shape): (0,) * _r)

    out = pl.pallas_call(
        functools.partial(sab_kernel, tb=tb, n=N),
        out_shape=jax.ShapeDtypeStruct((B * N, D), x.dtype),
        grid_spec=pltpu.PrefetchScalarGridSpec(
            num_scalar_prefetch=0,
            grid=(grid,),
            in_specs=[pl.BlockSpec((rows, D), lambda i: (i, 0))]
                     + [wspec(w.shape) for w in weights],
            out_specs=pl.BlockSpec((rows, D), lambda i: (i, 0)),
        ),
        compiler_params=pltpu.CompilerParams(
            dimension_semantics=("parallel",),
        ),
    )(x2, *weights)
    return out.reshape(B, N, D)


def init_params(key):
    """Deterministic synthetic init with PyTorch-equivalent shapes, packed for
    the kernel (pre-transposed weights, fused QKV, consolidated small vectors)."""
    ks = jax.random.split(key, 8)

    def u(k, shape, scale):
        return jax.random.uniform(k, shape, jnp.float32, -scale, scale)

    # nn.MultiheadAttention: in_proj_weight (3D, D), in_proj_bias (3D,)
    in_proj_w = u(ks[0], (3 * DIM, DIM), 1.0 / math.sqrt(DIM))
    in_proj_b = u(ks[1], (3 * DIM,), 1.0 / math.sqrt(DIM))
    out_proj_w = u(ks[2], (DIM, DIM), 1.0 / math.sqrt(DIM))
    out_proj_b = u(ks[3], (DIM,), 1.0 / math.sqrt(DIM))
    # ffn Linear weights are (out, in) in PyTorch.
    w1 = u(ks[4], (FF_HIDDEN, DIM), 1.0 / math.sqrt(DIM))
    b1 = u(ks[5], (FF_HIDDEN,), 1.0 / math.sqrt(DIM))
    w2 = u(ks[6], (DIM, FF_HIDDEN), 1.0 / math.sqrt(FF_HIDDEN))
    b2 = u(ks[7], (DIM,), 1.0 / math.sqrt(FF_HIDDEN))

    ln1w = jnp.ones((DIM,), jnp.float32)
    ln1b = jnp.zeros((DIM,), jnp.float32)
    ln2w = jnp.ones((DIM,), jnp.float32)
    ln2b = jnp.zeros((DIM,), jnp.float32)

    return {
        # packed small vectors: [ln1_w, ln1_b, ln2_w, ln2_b, out_proj_b, ffn_b2]
        "vecs": jnp.stack([ln1w, ln1b, ln2w, ln2b, out_proj_b, b2], axis=0),
        # fused QKV: x @ wqkv == x @ [Wq;Wk;Wv].T  -> columns [q | k | v]
        "wqkv": in_proj_w.T,                       # (D, 3D)
        "bqkv": in_proj_b.reshape(1, 3 * DIM),     # (1, 3D)
        "wo": out_proj_w.T,                        # (D, D)
        "w1": w1.T,                                # (D, FF)
        "b1": b1.reshape(1, FF_HIDDEN),            # (1, FF)
        "w2": w2.T,                                # (FF, D)
    }


def sab_reference(x, p):
    """Pure-JAX reference mirroring PyTorch semantics (exact-division softmax)."""
    def ln(v, w, b):
        m = jnp.mean(v, axis=-1, keepdims=True)
        va = jnp.mean((v - m) ** 2, axis=-1, keepdims=True)
        return (v - m) * jax.lax.rsqrt(va + EPS) * w + b

    B, N, D = x.shape
    vec = p["vecs"]
    ln1w, ln1b, ln2w, ln2b, bo, b2 = (vec[i] for i in range(6))

    xn = ln(x, ln1w, ln1b)
    qkv = xn @ p["wqkv"] + p["bqkv"][0]
    q, k, v = qkv[..., :D], qkv[..., D:2 * D], qkv[..., 2 * D:]
    qh = q.reshape(B, N, NUM_HEADS, HEAD_DIM).transpose(0, 2, 1, 3)
    kh = k.reshape(B, N, NUM_HEADS, HEAD_DIM).transpose(0, 2, 1, 3)
    vh = v.reshape(B, N, NUM_HEADS, HEAD_DIM).transpose(0, 2, 1, 3)
    s = jnp.einsum("bhqd,bhkd->bhqk", qh, kh) / math.sqrt(HEAD_DIM)
    pw = jax.nn.softmax(s, axis=-1)
    o = jnp.einsum("bhqk,bhkd->bhqd", pw, vh).transpose(0, 2, 1, 3).reshape(B, N, D)
    attn = o @ p["wo"] + bo
    x1 = x + attn
    xn2 = ln(x1, ln2w, ln2b)
    h1 = xn2 @ p["w1"] + p["b1"][0]
    h1 = jnp.where(h1 > 0, h1, LEAKY_SLOPE * h1)
    ff = h1 @ p["w2"] + b2
    return x1 + ff


if __name__ == "__main__":
    key = jax.random.PRNGKey(0)
    kx, kp = jax.random.split(key)

    B, N = 2, 8  # small set: batch=2, n=8, dim=32, heads=4
    x = jax.random.normal(kx, (B, N, DIM), jnp.float32)
    params = init_params(kp)

    out = sab_forward(x, params)
    out = jax.block_until_ready(out)

    ref = sab_reference(x, params)
    assert out.shape == (B, N, DIM)
    # Tolerance relaxed slightly because the kernel normalizes softmax with the
    # EUP approximate reciprocal (perf guidance); an exact-divide variant
    # matches the reference at 1e-4.
    assert jnp.allclose(out, ref, atol=5e-3, rtol=5e-3), "mismatch vs JAX reference"

    print("KERNEL_OK")
</pallas_src>

<mosaic_0001>
module attributes {stable_mosaic.version = 11 : i64} {
  func.func @sab_kernel(%arg0: i32, %arg1: memref<16x32xf32, #tpu.memory_space<vmem>>, %arg2: memref<6x32xf32, #tpu.memory_space<vmem>>, %arg3: memref<32x96xf32, #tpu.memory_space<vmem>>, %arg4: memref<1x96xf32, #tpu.memory_space<vmem>>, %arg5: memref<32x32xf32, #tpu.memory_space<vmem>>, %arg6: memref<32x128xf32, #tpu.memory_space<vmem>>, %arg7: memref<1x128xf32, #tpu.memory_space<vmem>>, %arg8: memref<128x32xf32, #tpu.memory_space<vmem>>, %arg9: memref<16x32xf32, #tpu.memory_space<vmem>>) attributes {dimension_semantics = [#tpu.dimension_semantics<parallel>], iteration_bounds = array<i64: 1>, scalar_prefetch = 0 : i64, scratch_operands = 0 : i64, tpu.core_type = #tpu.core_type<tc>, window_params = [{transform_indices = @transform_0, window_bounds = array<i64: 16, 32>}, {pipeline_mode = #tpu.pipeline_mode<synchronous>, transform_indices = @transform_1, window_bounds = array<i64: 6, 32>}, {pipeline_mode = #tpu.pipeline_mode<synchronous>, transform_indices = @transform_2, window_bounds = array<i64: 32, 96>}, {pipeline_mode = #tpu.pipeline_mode<synchronous>, transform_indices = @transform_3, window_bounds = array<i64: 1, 96>}, {pipeline_mode = #tpu.pipeline_mode<synchronous>, transform_indices = @transform_4, window_bounds = array<i64: 32, 32>}, {pipeline_mode = #tpu.pipeline_mode<synchronous>, transform_indices = @transform_5, window_bounds = array<i64: 32, 128>}, {pipeline_mode = #tpu.pipeline_mode<synchronous>, transform_indices = @transform_6, window_bounds = array<i64: 1, 128>}, {pipeline_mode = #tpu.pipeline_mode<synchronous>, transform_indices = @transform_7, window_bounds = array<i64: 128, 32>}, {transform_indices = @transform_8, window_bounds = array<i64: 16, 32>}]} {
    %c0 = arith.constant 0 : index
    %c0_0 = arith.constant 0 : index
    %0 = vector.load %arg1[%c0, %c0_0] : memref<16x32xf32, #tpu.memory_space<vmem>>, vector<16x32xf32>
    %c0_1 = arith.constant 0 : index
    %c0_2 = arith.constant 0 : index
    %1 = vector.load %arg2[%c0_1, %c0_2] : memref<6x32xf32, #tpu.memory_space<vmem>>, vector<6x32xf32>
    %2 = vector.extract_strided_slice %1 {offsets = [0, 0], sizes = [1, 32], strides = [1, 1]} : vector<6x32xf32> to vector<1x32xf32>
    %3 = vector.extract_strided_slice %1 {offsets = [1, 0], sizes = [1, 32], strides = [1, 1]} : vector<6x32xf32> to vector<1x32xf32>
    %4 = vector.extract_strided_slice %1 {offsets = [2, 0], sizes = [1, 32], strides = [1, 1]} : vector<6x32xf32> to vector<1x32xf32>
    %5 = vector.extract_strided_slice %1 {offsets = [3, 0], sizes = [1, 32], strides = [1, 1]} : vector<6x32xf32> to vector<1x32xf32>
    %6 = vector.extract_strided_slice %1 {offsets = [4, 0], sizes = [1, 32], strides = [1, 1]} : vector<6x32xf32> to vector<1x32xf32>
    %7 = vector.extract_strided_slice %1 {offsets = [5, 0], sizes = [1, 32], strides = [1, 1]} : vector<6x32xf32> to vector<1x32xf32>
    %cst = arith.constant dense<0.000000e+00> : vector<16xf32>
    %8 = vector.multi_reduction <add>, %0, %cst [1] : vector<16x32xf32> to vector<16xf32>
    %9 = vector.shape_cast %8 : vector<16xf32> to vector<16x1xf32>
    %cst_3 = arith.constant 3.200000e+01 : f32
    %10 = vector.broadcast %cst_3 : f32 to vector<16x1xf32>
    %11 = arith.divf %9, %10 : vector<16x1xf32>
    %12 = vector.broadcast %11 : vector<16x1xf32> to vector<16x32xf32>
    %13 = arith.subf %0, %12 : vector<16x32xf32>
    %14 = arith.mulf %13, %13 : vector<16x32xf32>
    %cst_4 = arith.constant dense<0.000000e+00> : vector<16xf32>
    %15 = vector.multi_reduction <add>, %14, %cst_4 [1] : vector<16x32xf32> to vector<16xf32>
    %16 = vector.shape_cast %15 : vector<16xf32> to vector<16x1xf32>
    %cst_5 = arith.constant 3.200000e+01 : f32
    %17 = vector.broadcast %cst_5 : f32 to vector<16x1xf32>
    %18 = arith.divf %16, %17 : vector<16x1xf32>
    %19 = vector.broadcast %11 : vector<16x1xf32> to vector<16x32xf32>
    %20 = arith.subf %0, %19 : vector<16x32xf32>
    %cst_6 = arith.constant 9.99999974E-6 : f32
    %21 = vector.broadcast %cst_6 : f32 to vector<16x1xf32>
    %22 = arith.addf %18, %21 : vector<16x1xf32>
    %23 = math.rsqrt %22 : vector<16x1xf32>
    %24 = vector.broadcast %23 : vector<16x1xf32> to vector<16x32xf32>
    %25 = arith.mulf %20, %24 : vector<16x32xf32>
    %26 = vector.broadcast %2 : vector<1x32xf32> to vector<16x32xf32>
    %27 = arith.mulf %25, %26 : vector<16x32xf32>
    %28 = vector.broadcast %3 : vector<1x32xf32> to vector<16x32xf32>
    %29 = arith.addf %27, %28 : vector<16x32xf32>
    %c0_7 = arith.constant 0 : index
    %c0_8 = arith.constant 0 : index
    %30 = vector.load %arg3[%c0_7, %c0_8] : memref<32x96xf32, #tpu.memory_space<vmem>>, vector<32x96xf32>
    %cst_9 = arith.constant dense<0.000000e+00> : vector<16x96xf32>
    %31 = tpu.matmul %29, %30, %cst_9 {dimension_numbers = #tpu.dot_dimension_numbers<[1], [0], [0], [1], [0, 0, 1, 1], [], []>} : vector<16x32xf32>, vector<32x96xf32>, vector<16x96xf32> -> vector<16x96xf32>
    %c0_10 = arith.constant 0 : index
    %c0_11 = arith.constant 0 : index
    %32 = vector.load %arg4[%c0_10, %c0_11] : memref<1x96xf32, #tpu.memory_space<vmem>>, vector<1x96xf32>
    %33 = vector.broadcast %32 : vector<1x96xf32> to vector<16x96xf32>
    %34 = arith.addf %31, %33 : vector<16x96xf32>
    %35 = vector.extract_strided_slice %34 {offsets = [0, 0], sizes = [16, 32], strides = [1, 1]} : vector<16x96xf32> to vector<16x32xf32>
    %36 = vector.shape_cast %35 : vector<16x32xf32> to vector<2x8x32xf32>
    %37 = vector.extract_strided_slice %34 {offsets = [0, 32], sizes = [16, 32], strides = [1, 1]} : vector<16x96xf32> to vector<16x32xf32>
    %38 = vector.shape_cast %37 : vector<16x32xf32> to vector<2x8x32xf32>
    %39 = vector.extract_strided_slice %34 {offsets = [0, 64], sizes = [16, 32], strides = [1, 1]} : vector<16x96xf32> to vector<16x32xf32>
    %40 = vector.shape_cast %39 : vector<16x32xf32> to vector<2x8x32xf32>
    %cst_12 = arith.constant 0.000000e+00 : f32
    %41 = vector.broadcast %cst_12 : f32 to vector<16x32xf32>
    %42 = vector.extract_strided_slice %36 {offsets = [0, 0, 0], sizes = [2, 8, 8], strides = [1, 1, 1]} : vector<2x8x32xf32> to vector<2x8x8xf32>
    %43 = vector.extract_strided_slice %38 {offsets = [0, 0, 0], sizes = [2, 8, 8], strides = [1, 1, 1]} : vector<2x8x32xf32> to vector<2x8x8xf32>
    %44 = vector.extract_strided_slice %40 {offsets = [0, 0, 0], sizes = [2, 8, 8], strides = [1, 1, 1]} : vector<2x8x32xf32> to vector<2x8x8xf32>
    "tpu.trace_start"() <{level = 10 : i32, message = "bqd,bkd->bqk"}> : () -> ()
    %cst_13 = arith.constant dense<0.000000e+00> : vector<2x8x8xf32>
    %45 = tpu.matmul %42, %43, %cst_13 {dimension_numbers = #tpu.dot_dimension_numbers<[2], [2], [1], [1], [0, 0, 0, 1, 1, 1], [0], [0]>} : vector<2x8x8xf32>, vector<2x8x8xf32>, vector<2x8x8xf32> -> vector<2x8x8xf32>
    "tpu.trace_stop"() : () -> ()
    %cst_14 = arith.constant 0.353553385 : f32
    %46 = vector.broadcast %cst_14 : f32 to vector<2x8x8xf32>
    %47 = arith.mulf %45, %46 : vector<2x8x8xf32>
    %cst_15 = arith.constant dense<0xFF800000> : vector<2x8xf32>
    %48 = vector.multi_reduction <maximumf>, %47, %cst_15 [2] : vector<2x8x8xf32> to vector<2x8xf32>
    %49 = vector.shape_cast %48 : vector<2x8xf32> to vector<2x8x1xf32>
    %50 = vector.broadcast %49 : vector<2x8x1xf32> to vector<2x8x8xf32>
    %51 = arith.subf %47, %50 : vector<2x8x8xf32>
    %52 = math.exp %51 : vector<2x8x8xf32>
    %cst_16 = arith.constant dense<0.000000e+00> : vector<2x8xf32>
    %53 = vector.multi_reduction <add>, %52, %cst_16 [2] : vector<2x8x8xf32> to vector<2x8xf32>
    %54 = vector.shape_cast %53 : vector<2x8xf32> to vector<2x8x1xf32>
    %55 = tpu.reciprocal %54 {approx = true} : vector<2x8x1xf32> -> vector<2x8x1xf32>
    %56 = vector.broadcast %55 : vector<2x8x1xf32> to vector<2x8x8xf32>
    %57 = arith.mulf %52, %56 : vector<2x8x8xf32>
    "tpu.trace_start"() <{level = 10 : i32, message = "bqk,bkd->bqd"}> : () -> ()
    %cst_17 = arith.constant dense<0.000000e+00> : vector<2x8x8xf32>
    %58 = tpu.matmul %57, %44, %cst_17 {dimension_numbers = #tpu.dot_dimension_numbers<[2], [1], [1], [2], [0, 0, 0, 1, 1, 2], [0], [0]>} : vector<2x8x8xf32>, vector<2x8x8xf32>, vector<2x8x8xf32> -> vector<2x8x8xf32>
    "tpu.trace_stop"() : () -> ()
    %59 = vector.shape_cast %58 : vector<2x8x8xf32> to vector<16x8xf32>
    %c0_18 = arith.constant 0 : index
    %c0_19 = arith.constant 0 : index
    %60 = vector.load %arg5[%c0_18, %c0_19] : memref<32x32xf32, #tpu.memory_space<vmem>>, vector<8x32xf32>
    %cst_20 = arith.constant dense<0.000000e+00> : vector<16x32xf32>
    %61 = tpu.matmul %59, %60, %cst_20 {dimension_numbers = #tpu.dot_dimension_numbers<[1], [0], [0], [1], [0, 0, 1, 1], [], []>} : vector<16x8xf32>, vector<8x32xf32>, vector<16x32xf32> -> vector<16x32xf32>
    %62 = arith.addf %41, %61 : vector<16x32xf32>
    %63 = vector.extract_strided_slice %36 {offsets = [0, 0, 8], sizes = [2, 8, 8], strides = [1, 1, 1]} : vector<2x8x32xf32> to vector<2x8x8xf32>
    %64 = vector.extract_strided_slice %38 {offsets = [0, 0, 8], sizes = [2, 8, 8], strides = [1, 1, 1]} : vector<2x8x32xf32> to vector<2x8x8xf32>
    %65 = vector.extract_strided_slice %40 {offsets = [0, 0, 8], sizes = [2, 8, 8], strides = [1, 1, 1]} : vector<2x8x32xf32> to vector<2x8x8xf32>
    "tpu.trace_start"() <{level = 10 : i32, message = "bqd,bkd->bqk"}> : () -> ()
    %cst_21 = arith.constant dense<0.000000e+00> : vector<2x8x8xf32>
    %66 = tpu.matmul %63, %64, %cst_21 {dimension_numbers = #tpu.dot_dimension_numbers<[2], [2], [1], [1], [0, 0, 0, 1, 1, 1], [0], [0]>} : vector<2x8x8xf32>, vector<2x8x8xf32>, vector<2x8x8xf32> -> vector<2x8x8xf32>
    "tpu.trace_stop"() : () -> ()
    %cst_22 = arith.constant 0.353553385 : f32
    %67 = vector.broadcast %cst_22 : f32 to vector<2x8x8xf32>
    %68 = arith.mulf %66, %67 : vector<2x8x8xf32>
    %cst_23 = arith.constant dense<0xFF800000> : vector<2x8xf32>
    %69 = vector.multi_reduction <maximumf>, %68, %cst_23 [2] : vector<2x8x8xf32> to vector<2x8xf32>
    %70 = vector.shape_cast %69 : vector<2x8xf32> to vector<2x8x1xf32>
    %71 = vector.broadcast %70 : vector<2x8x1xf32> to vector<2x8x8xf32>
    %72 = arith.subf %68, %71 : vector<2x8x8xf32>
    %73 = math.exp %72 : vector<2x8x8xf32>
    %cst_24 = arith.constant dense<0.000000e+00> : vector<2x8xf32>
    %74 = vector.multi_reduction <add>, %73, %cst_24 [2] : vector<2x8x8xf32> to vector<2x8xf32>
    %75 = vector.shape_cast %74 : vector<2x8xf32> to vector<2x8x1xf32>
    %76 = tpu.reciprocal %75 {approx = true} : vector<2x8x1xf32> -> vector<2x8x1xf32>
    %77 = vector.broadcast %76 : vector<2x8x1xf32> to vector<2x8x8xf32>
    %78 = arith.mulf %73, %77 : vector<2x8x8xf32>
    "tpu.trace_start"() <{level = 10 : i32, message = "bqk,bkd->bqd"}> : () -> ()
    %cst_25 = arith.constant dense<0.000000e+00> : vector<2x8x8xf32>
    %79 = tpu.matmul %78, %65, %cst_25 {dimension_numbers = #tpu.dot_dimension_numbers<[2], [1], [1], [2], [0, 0, 0, 1, 1, 2], [0], [0]>} : vector<2x8x8xf32>, vector<2x8x8xf32>, vector<2x8x8xf32> -> vector<2x8x8xf32>
    "tpu.trace_stop"() : () -> ()
    %80 = vector.shape_cast %79 : vector<2x8x8xf32> to vector<16x8xf32>
    %c8 = arith.constant 8 : index
    %c0_26 = arith.constant 0 : index
    %81 = vector.load %arg5[%c8, %c0_26] : memref<32x32xf32, #tpu.memory_space<vmem>>, vector<8x32xf32>
    %cst_27 = arith.constant dense<0.000000e+00> : vector<16x32xf32>
    %82 = tpu.matmul %80, %81, %cst_27 {dimension_numbers = #tpu.dot_dimension_numbers<[1], [0], [0], [1], [0, 0, 1, 1], [], []>} : vector<16x8xf32>, vector<8x32xf32>, vector<16x32xf32> -> vector<16x32xf32>
    %83 = arith.addf %62, %82 : vector<16x32xf32>
    %84 = vector.extract_strided_slice %36 {offsets = [0, 0, 16], sizes = [2, 8, 8], strides = [1, 1, 1]} : vector<2x8x32xf32> to vector<2x8x8xf32>
    %85 = vector.extract_strided_slice %38 {offsets = [0, 0, 16], sizes = [2, 8, 8], strides = [1, 1, 1]} : vector<2x8x32xf32> to vector<2x8x8xf32>
    %86 = vector.extract_strided_slice %40 {offsets = [0, 0, 16], sizes = [2, 8, 8], strides = [1, 1, 1]} : vector<2x8x32xf32> to vector<2x8x8xf32>
    "tpu.trace_start"() <{level = 10 : i32, message = "bqd,bkd->bqk"}> : () -> ()
    %cst_28 = arith.constant dense<0.000000e+00> : vector<2x8x8xf32>
    %87 = tpu.matmul %84, %85, %cst_28 {dimension_numbers = #tpu.dot_dimension_numbers<[2], [2], [1], [1], [0, 0, 0, 1, 1, 1], [0], [0]>} : vector<2x8x8xf32>, vector<2x8x8xf32>, vector<2x8x8xf32> -> vector<2x8x8xf32>
    "tpu.trace_stop"() : () -> ()
    %cst_29 = arith.constant 0.353553385 : f32
    %88 = vector.broadcast %cst_29 : f32 to vector<2x8x8xf32>
    %89 = arith.mulf %87, %88 : vector<2x8x8xf32>
    %cst_30 = arith.constant dense<0xFF800000> : vector<2x8xf32>
    %90 = vector.multi_reduction <maximumf>, %89, %cst_30 [2] : vector<2x8x8xf32> to vector<2x8xf32>
    %91 = vector.shape_cast %90 : vector<2x8xf32> to vector<2x8x1xf32>
    %92 = vector.broadcast %91 : vector<2x8x1xf32> to vector<2x8x8xf32>
    %93 = arith.subf %89, %92 : vector<2x8x8xf32>
    %94 = math.exp %93 : vector<2x8x8xf32>
    %cst_31 = arith.constant dense<0.000000e+00> : vector<2x8xf32>
    %95 = vector.multi_reduction <add>, %94, %cst_31 [2] : vector<2x8x8xf32> to vector<2x8xf32>
    %96 = vector.shape_cast %95 : vector<2x8xf32> to vector<2x8x1xf32>
    %97 = tpu.reciprocal %96 {approx = true} : vector<2x8x1xf32> -> vector<2x8x1xf32>
    %98 = vector.broadcast %97 : vector<2x8x1xf32> to vector<2x8x8xf32>
    %99 = arith.mulf %94, %98 : vector<2x8x8xf32>
    "tpu.trace_start"() <{level = 10 : i32, message = "bqk,bkd->bqd"}> : () -> ()
    %cst_32 = arith.constant dense<0.000000e+00> : vector<2x8x8xf32>
    %100 = tpu.matmul %99, %86, %cst_32 {dimension_numbers = #tpu.dot_dimension_numbers<[2], [1], [1], [2], [0, 0, 0, 1, 1, 2], [0], [0]>} : vector<2x8x8xf32>, vector<2x8x8xf32>, vector<2x8x8xf32> -> vector<2x8x8xf32>
    "tpu.trace_stop"() : () -> ()
    %101 = vector.shape_cast %100 : vector<2x8x8xf32> to vector<16x8xf32>
    %c16 = arith.constant 16 : index
    %c0_33 = arith.constant 0 : index
    %102 = vector.load %arg5[%c16, %c0_33] : memref<32x32xf32, #tpu.memory_space<vmem>>, vector<8x32xf32>
    %cst_34 = arith.constant dense<0.000000e+00> : vector<16x32xf32>
    %103 = tpu.matmul %101, %102, %cst_34 {dimension_numbers = #tpu.dot_dimension_numbers<[1], [0], [0], [1], [0, 0, 1, 1], [], []>} : vector<16x8xf32>, vector<8x32xf32>, vector<16x32xf32> -> vector<16x32xf32>
    %104 = arith.addf %83, %103 : vector<16x32xf32>
    %105 = vector.extract_strided_slice %36 {offsets = [0, 0, 24], sizes = [2, 8, 8], strides = [1, 1, 1]} : vector<2x8x32xf32> to vector<2x8x8xf32>
    %106 = vector.extract_strided_slice %38 {offsets = [0, 0, 24], sizes = [2, 8, 8], strides = [1, 1, 1]} : vector<2x8x32xf32> to vector<2x8x8xf32>
    %107 = vector.extract_strided_slice %40 {offsets = [0, 0, 24], sizes = [2, 8, 8], strides = [1, 1, 1]} : vector<2x8x32xf32> to vector<2x8x8xf32>
    "tpu.trace_start"() <{level = 10 : i32, message = "bqd,bkd->bqk"}> : () -> ()
    %cst_35 = arith.constant dense<0.000000e+00> : vector<2x8x8xf32>
    %108 = tpu.matmul %105, %106, %cst_35 {dimension_numbers = #tpu.dot_dimension_numbers<[2], [2], [1], [1], [0, 0, 0, 1, 1, 1], [0], [0]>} : vector<2x8x8xf32>, vector<2x8x8xf32>, vector<2x8x8xf32> -> vector<2x8x8xf32>
    "tpu.trace_stop"() : () -> ()
    %cst_36 = arith.constant 0.353553385 : f32
    %109 = vector.broadcast %cst_36 : f32 to vector<2x8x8xf32>
    %110 = arith.mulf %108, %109 : vector<2x8x8xf32>
    %cst_37 = arith.constant dense<0xFF800000> : vector<2x8xf32>
    %111 = vector.multi_reduction <maximumf>, %110, %cst_37 [2] : vector<2x8x8xf32> to vector<2x8xf32>
    %112 = vector.shape_cast %111 : vector<2x8xf32> to vector<2x8x1xf32>
    %113 = vector.broadcast %112 : vector<2x8x1xf32> to vector<2x8x8xf32>
    %114 = arith.subf %110, %113 : vector<2x8x8xf32>
    %115 = math.exp %114 : vector<2x8x8xf32>
    %cst_38 = arith.constant dense<0.000000e+00> : vector<2x8xf32>
    %116 = vector.multi_reduction <add>, %115, %cst_38 [2] : vector<2x8x8xf32> to vector<2x8xf32>
    %117 = vector.shape_cast %116 : vector<2x8xf32> to vector<2x8x1xf32>
    %118 = tpu.reciprocal %117 {approx = true} : vector<2x8x1xf32> -> vector<2x8x1xf32>
    %119 = vector.broadcast %118 : vector<2x8x1xf32> to vector<2x8x8xf32>
    %120 = arith.mulf %115, %119 : vector<2x8x8xf32>
    "tpu.trace_start"() <{level = 10 : i32, message = "bqk,bkd->bqd"}> : () -> ()
    %cst_39 = arith.constant dense<0.000000e+00> : vector<2x8x8xf32>
    %121 = tpu.matmul %120, %107, %cst_39 {dimension_numbers = #tpu.dot_dimension_numbers<[2], [1], [1], [2], [0, 0, 0, 1, 1, 2], [0], [0]>} : vector<2x8x8xf32>, vector<2x8x8xf32>, vector<2x8x8xf32> -> vector<2x8x8xf32>
    "tpu.trace_stop"() : () -> ()
    %122 = vector.shape_cast %121 : vector<2x8x8xf32> to vector<16x8xf32>
    %c24 = arith.constant 24 : index
    %c0_40 = arith.constant 0 : index
    %123 = vector.load %arg5[%c24, %c0_40] : memref<32x32xf32, #tpu.memory_space<vmem>>, vector<8x32xf32>
    %cst_41 = arith.constant dense<0.000000e+00> : vector<16x32xf32>
    %124 = tpu.matmul %122, %123, %cst_41 {dimension_numbers = #tpu.dot_dimension_numbers<[1], [0], [0], [1], [0, 0, 1, 1], [], []>} : vector<16x8xf32>, vector<8x32xf32>, vector<16x32xf32> -> vector<16x32xf32>
    %125 = arith.addf %104, %124 : vector<16x32xf32>
    %126 = vector.broadcast %6 : vector<1x32xf32> to vector<16x32xf32>
    %127 = arith.addf %125, %126 : vector<16x32xf32>
    %128 = arith.addf %0, %127 : vector<16x32xf32>
    %cst_42 = arith.constant dense<0.000000e+00> : vector<16xf32>
    %129 = vector.multi_reduction <add>, %128, %cst_42 [1] : vector<16x32xf32> to vector<16xf32>
    %130 = vector.shape_cast %129 : vector<16xf32> to vector<16x1xf32>
    %cst_43 = arith.constant 3.200000e+01 : f32
    %131 = vector.broadcast %cst_43 : f32 to vector<16x1xf32>
    %132 = arith.divf %130, %131 : vector<16x1xf32>
    %133 = vector.broadcast %132 : vector<16x1xf32> to vector<16x32xf32>
    %134 = arith.subf %128, %133 : vector<16x32xf32>
    %135 = arith.mulf %134, %134 : vector<16x32xf32>
    %cst_44 = arith.constant dense<0.000000e+00> : vector<16xf32>
    %136 = vector.multi_reduction <add>, %135, %cst_44 [1] : vector<16x32xf32> to vector<16xf32>
    %137 = vector.shape_cast %136 : vector<16xf32> to vector<16x1xf32>
    %cst_45 = arith.constant 3.200000e+01 : f32
    %138 = vector.broadcast %cst_45 : f32 to vector<16x1xf32>
    %139 = arith.divf %137, %138 : vector<16x1xf32>
    %140 = vector.broadcast %132 : vector<16x1xf32> to vector<16x32xf32>
    %141 = arith.subf %128, %140 : vector<16x32xf32>
    %cst_46 = arith.constant 9.99999974E-6 : f32
    %142 = vector.broadcast %cst_46 : f32 to vector<16x1xf32>
    %143 = arith.addf %139, %142 : vector<16x1xf32>
    %144 = math.rsqrt %143 : vector<16x1xf32>
    %145 = vector.broadcast %144 : vector<16x1xf32> to vector<16x32xf32>
    %146 = arith.mulf %141, %145 : vector<16x32xf32>
    %147 = vector.broadcast %4 : vector<1x32xf32> to vector<16x32xf32>
    %148 = arith.mulf %146, %147 : vector<16x32xf32>
    %149 = vector.broadcast %5 : vector<1x32xf32> to vector<16x32xf32>
    %150 = arith.addf %148, %149 : vector<16x32xf32>
    %c0_47 = arith.constant 0 : index
    %c0_48 = arith.constant 0 : index
    %151 = vector.load %arg6[%c0_47, %c0_48] : memref<32x128xf32, #tpu.memory_space<vmem>>, vector<32x128xf32>
    %cst_49 = arith.constant dense<0.000000e+00> : vector<16x128xf32>
    %152 = tpu.matmul %150, %151, %cst_49 {dimension_numbers = #tpu.dot_dimension_numbers<[1], [0], [0], [1], [0, 0, 1, 1], [], []>} : vector<16x32xf32>, vector<32x128xf32>, vector<16x128xf32> -> vector<16x128xf32>
    %c0_50 = arith.constant 0 : index
    %c0_51 = arith.constant 0 : index
    %153 = vector.load %arg7[%c0_50, %c0_51] : memref<1x128xf32, #tpu.memory_space<vmem>>, vector<1x128xf32>
    %154 = vector.broadcast %153 : vector<1x128xf32> to vector<16x128xf32>
    %155 = arith.addf %152, %154 : vector<16x128xf32>
    %cst_52 = arith.constant 0.000000e+00 : f32
    %156 = vector.broadcast %cst_52 : f32 to vector<16x128xf32>
    %157 = arith.cmpf ogt, %155, %156 : vector<16x128xf32>
    %cst_53 = arith.constant 3.000000e-01 : f32
    %158 = vector.broadcast %cst_53 : f32 to vector<16x128xf32>
    %159 = arith.mulf %158, %155 : vector<16x128xf32>
    %160 = arith.select %157, %155, %159 : vector<16x128xi1>, vector<16x128xf32>
    %c0_54 = arith.constant 0 : index
    %c0_55 = arith.constant 0 : index
    %161 = vector.load %arg8[%c0_54, %c0_55] : memref<128x32xf32, #tpu.memory_space<vmem>>, vector<128x32xf32>
    %cst_56 = arith.constant dense<0.000000e+00> : vector<16x32xf32>
    %162 = tpu.matmul %160, %161, %cst_56 {dimension_numbers = #tpu.dot_dimension_numbers<[1], [0], [0], [1], [0, 0, 1, 1], [], []>} : vector<16x128xf32>, vector<128x32xf32>, vector<16x32xf32> -> vector<16x32xf32>
    %163 = vector.broadcast %7 : vector<1x32xf32> to vector<16x32xf32>
    %164 = arith.addf %162, %163 : vector<16x32xf32>
    %165 = arith.addf %128, %164 : vector<16x32xf32>
    %c0_57 = arith.constant 0 : index
    %c0_58 = arith.constant 0 : index
    %166 = vector.load %arg9[%c0_57, %c0_58] : memref<16x32xf32, #tpu.memory_space<vmem>>, vector<16x32xf32>
    tpu.vector_store %arg9[%c0_57, %c0_58], %165 {strides = array<i32>} : memref<16x32xf32, #tpu.memory_space<vmem>>, vector<16x32xf32>,
    return
  }
  func.func @transform_0(%arg0: i32) -> (i32, i32) {
    %c0_i32 = arith.constant 0 : i32
    %c0_i32_0 = arith.constant 0 : i32
    return %arg0, %c0_i32 : i32, i32
  }
  func.func @transform_1(%arg0: i32) -> (i32, i32) {
    %c0_i32 = arith.constant 0 : i32
    %c0_i32_0 = arith.constant 0 : i32
    %c0_i32_1 = arith.constant 0 : i32
    return %c0_i32, %c0_i32_0 : i32, i32
  }
  func.func @transform_2(%arg0: i32) -> (i32, i32) {
    %c0_i32 = arith.constant 0 : i32
    %c0_i32_0 = arith.constant 0 : i32
    %c0_i32_1 = arith.constant 0 : i32
    return %c0_i32, %c0_i32_0 : i32, i32
  }
  func.func @transform_3(%arg0: i32) -> (i32, i32) {
    %c0_i32 = arith.constant 0 : i32
    %c0_i32_0 = arith.constant 0 : i32
    %c0_i32_1 = arith.constant 0 : i32
    return %c0_i32, %c0_i32_0 : i32, i32
  }
  func.func @transform_4(%arg0: i32) -> (i32, i32) {
    %c0_i32 = arith.constant 0 : i32
    %c0_i32_0 = arith.constant 0 : i32
    %c0_i32_1 = arith.constant 0 : i32
    return %c0_i32, %c0_i32_0 : i32, i32
  }
  func.func @transform_5(%arg0: i32) -> (i32, i32) {
    %c0_i32 = arith.constant 0 : i32
    %c0_i32_0 = arith.constant 0 : i32
    %c0_i32_1 = arith.constant 0 : i32
    return %c0_i32, %c0_i32_0 : i32, i32
  }
  func.func @transform_6(%arg0: i32) -> (i32, i32) {
    %c0_i32 = arith.constant 0 : i32
    %c0_i32_0 = arith.constant 0 : i32
    %c0_i32_1 = arith.constant 0 : i32
    return %c0_i32, %c0_i32_0 : i32, i32
  }
  func.func @transform_7(%arg0: i32) -> (i32, i32) {
    %c0_i32 = arith.constant 0 : i32
    %c0_i32_0 = arith.constant 0 : i32
    %c0_i32_1 = arith.constant 0 : i32
    return %c0_i32, %c0_i32_0 : i32, i32
  }
  func.func @transform_8(%arg0: i32) -> (i32, i32) {
    %c0_i32 = arith.constant 0 : i32
    %c0_i32_0 = arith.constant 0 : i32
    return %arg0, %c0_i32 : i32, i32
  }
}

</mosaic_0001>

<llo_original>
// kernel: tpu_custom_call.1
$region0: #{tpu_custom_call.1}
  #allocation0 [shape = 'u32[]', space=smem, size = 0x4, offset = 0x4, fixed_abs, tag = 'smem constant byte address 0x4 - core index']
  #allocation1 [shape = 'u32[144,128]{1,0:T(1,128)}', space=vmem, size = 0x12000, scoped, tag = 'internal scratch']
  %s0 = inlined_call_operand.vmem [shape: f32[16,32], index: 0, kind: input, shape index: {}]
  %s1 = inlined_call_operand.vmem [shape: f32[6,32], index: 1, kind: input, shape index: {}]
  %s2 = inlined_call_operand.vmem [shape: f32[32,96], index: 2, kind: input, shape index: {}]
  %s3 = inlined_call_operand.vmem [shape: f32[1,96], index: 3, kind: input, shape index: {}]
  %s4 = inlined_call_operand.vmem [shape: f32[32,32], index: 4, kind: input, shape index: {}]
  %s5 = inlined_call_operand.vmem [shape: f32[32,128], index: 5, kind: input, shape index: {}]
  %s6 = inlined_call_operand.vmem [shape: f32[1,128], index: 6, kind: input, shape index: {}]
  %s7 = inlined_call_operand.vmem [shape: f32[128,32], index: 7, kind: input, shape index: {}]
  %s8 = inlined_call_operand.hbm [shape: f32[16,32], index: 8, kind: output, shape index: {}]
  %s9 = sld [smem:[#allocation0]]
  $region42: #{tpu_custom_call.1} parent=0
    _
  %s11 = ssub.s32 1, %s9
  %s12 = scalar_select 0, %s11, %s9
  $region1: #{tpu_custom_call.1} parent=0
    #allocation2 [shape = 'u8[8192]{0}', space=vmem, size = 0x2000, scoped, tag = 'output window, operand 0, single buffered']
    #allocation3 [shape = 's32[1]{0}', space=sflag, size = 0x4, scoped, tag = 'scoped memory for tpu_custom_call.1']
    %13 = vsyncpa [#allocation3], 0
    // Predicated region
    $region2: #{tpu_custom_call.1} parent=1 // pred_check
      _
    $region3: #{tpu_custom_call.1} parent=1 // pred_check_branch
      %15 = sbr.rel (0) target = $region5
    $region4: #{tpu_custom_call.1} parent=1 // pred_region
      _
    $region5: #{tpu_custom_call.1} parent=1 // pred_fallthru
      _
    // Predicated region
    $region6: #{tpu_custom_call.1} parent=1 // pred_check
      _
    $region7: #{tpu_custom_call.1} parent=1 // pred_check_branch
      %17 = sbr.rel (0) target = $region9
    $region8: #{tpu_custom_call.1} parent=1 // pred_region
      _
    $region9: #{tpu_custom_call.1} parent=1 // pred_fallthru
      _
    // Predicated region
    $region10: #{tpu_custom_call.1} parent=1 // pred_check
      _
    $region11: #{tpu_custom_call.1} parent=1 // pred_check_branch
      %19 = sbr.rel (0) target = $region13
    $region12: #{tpu_custom_call.1} parent=1 // pred_region
      _
    $region13: #{tpu_custom_call.1} parent=1 // pred_fallthru
      _
    // Predicated region
    $region14: #{tpu_custom_call.1} parent=1 // pred_check
      _
    $region15: #{tpu_custom_call.1} parent=1 // pred_check_branch
      %21 = sbr.rel (0) target = $region17
    $region16: #{tpu_custom_call.1} parent=1 // pred_region
      _
    $region17: #{tpu_custom_call.1} parent=1 // pred_fallthru
      _
    // Predicated region
    $region18: #{tpu_custom_call.1} parent=1 // pred_check
      _
    $region19: #{tpu_custom_call.1} parent=1 // pred_check_branch
      %23 = sbr.rel (0) target = $region21
    $region20: #{tpu_custom_call.1} parent=1 // pred_region
      _
    $region21: #{tpu_custom_call.1} parent=1 // pred_fallthru
      _
    // Predicated region
    $region22: #{tpu_custom_call.1} parent=1 // pred_check
      _
    $region23: #{tpu_custom_call.1} parent=1 // pred_check_branch
      %25 = sbr.rel (0) target = $region25
    $region24: #{tpu_custom_call.1} parent=1 // pred_region
      _
    $region25: #{tpu_custom_call.1} parent=1 // pred_fallthru
      _
    // Predicated region
    $region26: #{tpu_custom_call.1} parent=1 // pred_check
      _
    $region27: #{tpu_custom_call.1} parent=1 // pred_check_branch
      %27 = sbr.rel (0) target = $region29
    $region28: #{tpu_custom_call.1} parent=1 // pred_region
      _
    $region29: #{tpu_custom_call.1} parent=1 // pred_fallthru
      _
    // Predicated region
    $region30: #{tpu_custom_call.1} parent=1 // pred_check
      _
    $region31: #{tpu_custom_call.1} parent=1 // pred_check_branch
      %29 = sbr.rel (0) target = $region33
    $region32: #{tpu_custom_call.1} parent=1 // pred_region
      _
    $region33: #{tpu_custom_call.1} parent=1 // pred_fallthru
      _
    %v30 = vld [vmem:[%s0] sm:$0xff]
    %v31 = vld [vmem:[%s0 + $0x8] sm:$0xff]
    %v32 = vld [vmem:[%s1] sm:$0x3f]
    %vm33 = vcmask 261120
    %v34 = vsel %vm33, %v30, 0.0
    %35 = vadd.xlane.f32.xlu0 %v34
    %v36 = vpop.xlane.xlu0 %35
    %v37 = vsel %vm33, %v31, 0.0
    %38 = vadd.xlane.f32.xlu0 %v37
    %v39 = vpop.xlane.xlu0 %38
    %v40 = vrcp.pop 32.0
    %v41 = vmul.f32 %v36, %v40
    %v42 = vmul.f32 %v39, %v40
    %v43 = vsub.f32 %v30, %v41
    %v44 = vsub.f32 %v31, %v42
    %v45 = vmul.f32 %v43, %v43
    %v46 = vmul.f32 %v44, %v44
    %v47 = vsel %vm33, %v45, 0.0
    %48 = vadd.xlane.f32.xlu0 %v47
    %v49 = vpop.xlane.xlu0 %48
    %v50 = vsel %vm33, %v46, 0.0
    %51 = vadd.xlane.f32.xlu0 %v50
    %v52 = vpop.xlane.xlu0 %51
    %v53 = vmul.f32 %v49, %v40
    %v54 = vmul.f32 %v52, %v40
    %v55 = vadd.f32 %v53, 1e-05
    %v56 = vadd.f32 %v54, 1e-05
    %v57 = vrsqrt.pop %v55
    %v58 = vrsqrt.pop %v56
    %v59 = vmul.f32 %v43, %v57
    %v60 = vmul.f32 %v44, %v58
    %v61 = vlaneseq
    %v62 = vshrl.u32 %v61, 7
    %v63 = vsub.s32 0, %v62
    %v64 = vrot.slane %v32, %v63
    %v65 = vmul.f32 %v59, %v64
    %v66 = vmul.f32 %v60, %v64
    %v67 = vlaneseq
    %v68 = vshrl.u32 %v67, 7
    %v69 = vsub.s32 1, %v68
    %v70 = vrot.slane %v32, %v69
    %v71 = vadd.f32 %v65, %v70
    %v72 = vadd.f32 %v66, %v70
    %v73 = vld [vmem:[%s2] sm:$0xff]
    %v74 = vld [vmem:[%s2 + $0x8] sm:$0xff]
    %v75 = vld [vmem:[%s2 + $0x10] sm:$0xff]
    %v76 = vld [vmem:[%s2 + $0x18] sm:$0xff]
    %v77 = vld [vmem:[%s3] sm:$0x1]
    %v79 = vlaneseq
    %v80 = vshrl.u32 %v79, 7
    %v81 = vsub.s32 0, %v80
    %v82 = vrot.slane %v77, %v81
    %v85 = vsel %vm33, %v71, 0
    %v88 = vsel %vm33, %v72, 0
    %90 = vmatprep.subr.mxu0 0.0
    %91 = vmatpush1.msra.mxu0 %v73
    %92 = vmatprep.subr.mxu0 0.0
    %93 = vmatpush1.msra.mxu0 %v74
    %94 = vmatprep.subr.mxu0 0.0
    %95 = vmatpush1.msra.mxu0 %v75
    %96 = vmatprep.subr.mxu0 0.0
    %97 = vmatpush1.msra.mxu0 %v76
    %98 = vmatprep.subr.mxu0 0.0
    %99 = vmatpush1.msra.mxu0 0.0
    %100 = vmatprep.subr.mxu0 0.0
    %101 = vmatpush1.msra.mxu0 0.0
    %102 = vmatprep.subr.mxu0 0.0
    %103 = vmatpush1.msra.mxu0 0.0
    %104 = vmatprep.subr.mxu0 0.0
    %105 = vmatpush1.msra.mxu0 0.0
    %106 = vmatprep.subr.mxu0 0.0
    %107 = vmatpush1.msra.mxu0 0.0
    %108 = vmatprep.subr.mxu0 0.0
    %109 = vmatpush1.msra.mxu0 0.0
    %110 = vmatprep.subr.mxu0 0.0
    %111 = vmatpush1.msra.mxu0 0.0
    %112 = vmatprep.subr.mxu0 0.0
    %113 = vmatpush1.msra.mxu0 0.0
    %114 = vmatprep.subr.mxu0 0.0
    %115 = vmatpush1.msra.mxu0 0.0
    %116 = vmatprep.subr.mxu0 0.0
    %117 = vmatpush1.msra.mxu0 0.0
    %118 = vmatprep.subr.mxu0 0.0
    %119 = vmatpush1.msra.mxu0 0.0
    %120 = vmatprep.subr.mxu0 0.0
    %121 = vmatpush1.msra.mxu0 0.0
    %122 = vmatprep.subr.mxu0 0.0
    %123 = vmatpush1.msra.mxu0 0.0
    %124 = vmatprep.subr.mxu0 0.0
    %125 = vmatpush1.msra.mxu0 0.0
    %126 = vmatprep.subr.mxu0 0.0
    %127 = vmatpush1.msra.mxu0 0.0
    %128 = vmatprep.subr.mxu0 0.0
    %129 = vmatpush1.msra.mxu0 0.0
    %130 = vmatprep.subr.mxu0 0.0
    %131 = vmatpush1.msra.mxu0 0.0
    %132 = vmatprep.subr.mxu0 0.0
    %133 = vmatpush1.msra.mxu0 0.0
    %134 = vmatprep.subr.mxu0 0.0
    %135 = vmatpush1.msra.mxu0 0.0
    %136 = vmatprep.subr.mxu0 0.0
    %137 = vmatpush1.msra.mxu0 0.0
    %138 = vmatprep.subr.mxu0 0.0
    %139 = vmatpush1.msra.mxu0 0.0
    %140 = vmatprep.subr.mxu0 0.0
    %141 = vmatpush1.msra.mxu0 0.0
    %142 = vmatprep.subr.mxu0 0.0
    %143 = vmatpush1.msra.mxu0 0.0
    %144 = vmatprep.subr.mxu0 0.0
    %145 = vmatpush1.msra.mxu0 0.0
    %146 = vmatprep.subr.mxu0 0.0
    %147 = vmatpush1.msra.mxu0 0.0
    %148 = vmatprep.subr.mxu0 0.0
    %149 = vmatpush1.msra.mxu0 0.0
    %150 = vmatprep.subr.mxu0 0.0
    %151 = vmatpush1.msra.mxu0 0.0
    %152 = vmatprep.subr.mxu0 0.0
    %153 = vmatpush1.msra.mxu0 0.0
    %154 = vmatprep.mubr.f32.mxu0 0.0
    %155 = vmatmul.mubr.f32.gmra.mrb[0].mxu0 %v85
    %v156 = vpop.f32.mrb[0].mxu0
    %v157 = vadd.f32 %v82, %v156
    %v158 = vpop.f32.mrb[0].mxu0
    %159 = vmatprep.mubr.f32.mxu0 0.0
    %160 = vmatmul.mubr.f32.gmra.mrb[0].mxu0 %v88
    %v161 = vpop.f32.mrb[0].mxu0
    %v162 = vadd.f32 %v82, %v161
    %v163 = vpop.f32.mrb[0].mxu0
    %164 = vdwg.mxu0
    %166 = vrot.lane.b32.xlu0 %v157, 96
    %v167 = vpop.permute.xlu0 %166
    %vm168 = vcmask 64512
    %v169 = vsel %vm168, %v157, 0
    %v171 = vsel %vm168, %v167, 0
    %173 = vmatprep.subr.mxu0 0.0
    %174 = vmatpush1.xpose.msra.mxu0 %v171
    %175 = vmatprep.subr.mxu0 0.0
    %176 = vmatpush1.xpose.msra.mxu0 0.0
    %177 = vmatprep.subr.mxu0 0.0
    %178 = vmatpush1.xpose.msra.mxu0 0.0
    %179 = vmatprep.subr.mxu0 0.0
    %180 = vmatpush1.xpose.msra.mxu0 0.0
    %181 = vmatprep.subr.mxu0 0.0
    %182 = vmatpush1.xpose.msra.mxu0 0.0
    %183 = vmatprep.subr.mxu0 0.0
    %184 = vmatpush1.xpose.msra.mxu0 0.0
    %185 = vmatprep.subr.mxu0 0.0
    %186 = vmatpush1.xpose.msra.mxu0 0.0
    %187 = vmatprep.subr.mxu0 0.0
    %188 = vmatpush1.xpose.msra.mxu0 0.0
    %189 = vmatprep.subr.mxu0 0.0
    %190 = vmatpush1.xpose.msra.mxu0 0.0
    %191 = vmatprep.subr.mxu0 0.0
    %192 = vmatpush1.xpose.msra.mxu0 0.0
    %193 = vmatprep.subr.mxu0 0.0
    %194 = vmatpush1.xpose.msra.mxu0 0.0
    %195 = vmatprep.subr.mxu0 0.0
    %196 = vmatpush1.xpose.msra.mxu0 0.0
    %197 = vmatprep.subr.mxu0 0.0
    %198 = vmatpush1.xpose.msra.mxu0 0.0
    %199 = vmatprep.subr.mxu0 0.0
    %200 = vmatpush1.xpose.msra.mxu0 0.0
    %201 = vmatprep.subr.mxu0 0.0
    %202 = vmatpush1.xpose.msra.mxu0 0.0
    %203 = vmatprep.subr.mxu0 0.0
    %204 = vmatpush1.xpose.msra.mxu0 0.0
    %205 = vmatprep.subr.mxu0 0.0
    %206 = vmatpush1.xpose.msra.mxu0 0.0
    %207 = vmatprep.subr.mxu0 0.0
    %208 = vmatpush1.xpose.msra.mxu0 0.0
    %209 = vmatprep.subr.mxu0 0.0
    %210 = vmatpush1.xpose.msra.mxu0 0.0
    %211 = vmatprep.subr.mxu0 0.0
    %212 = vmatpush1.xpose.msra.mxu0 0.0
    %213 = vmatprep.subr.mxu0 0.0
    %214 = vmatpush1.xpose.msra.mxu0 0.0
    %215 = vmatprep.subr.mxu0 0.0
    %216 = vmatpush1.xpose.msra.mxu0 0.0
    %217 = vmatprep.subr.mxu0 0.0
    %218 = vmatpush1.xpose.msra.mxu0 0.0
    %219 = vmatprep.subr.mxu0 0.0
    %220 = vmatpush1.xpose.msra.mxu0 0.0
    %221 = vmatprep.subr.mxu0 0.0
    %222 = vmatpush1.xpose.msra.mxu0 0.0
    %223 = vmatprep.subr.mxu0 0.0
    %224 = vmatpush1.xpose.msra.mxu0 0.0
    %225 = vmatprep.subr.mxu0 0.0
    %226 = vmatpush1.xpose.msra.mxu0 0.0
    %227 = vmatprep.subr.mxu0 0.0
    %228 = vmatpush1.xpose.msra.mxu0 0.0
    %229 = vmatprep.subr.mxu0 0.0
    %230 = vmatpush1.xpose.msra.mxu0 0.0
    %231 = vmatprep.subr.mxu0 0.0
    %232 = vmatpush1.xpose.msra.mxu0 0.0
    %233 = vmatprep.subr.mxu0 0.0
    %234 = vmatpush1.xpose.msra.mxu0 0.0
    %235 = vmatprep.subr.mxu0 0.0
    %236 = vmatpush1.xpose.msra.mxu0 0.0
    %237 = vmatprep.mubr.f32.mxu0 0.0
    %238 = vmatmul.mubr.f32.gmra.mrb[0].mxu0 %v169
    %v239 = vpop.f32.mrb[0].mxu0
    %v240 = vadd.f32 0.0, %v239
    %v241 = vpop.f32.mrb[0].mxu0
    %242 = vdwg.mxu0
    %244 = vrot.lane.b32.xlu0 %v162, 96
    %v245 = vpop.permute.xlu0 %244
    %v246 = vsel %vm168, %v162, 0
    %v248 = vsel %vm168, %v245, 0
    %250 = vmatprep.subr.mxu0 0.0
    %251 = vmatpush1.xpose.msra.mxu0 %v248
    %252 = vmatprep.subr.mxu0 0.0
    %253 = vmatpush1.xpose.msra.mxu0 0.0
    %254 = vmatprep.subr.mxu0 0.0
    %255 = vmatpush1.xpose.msra.mxu0 0.0
    %256 = vmatprep.subr.mxu0 0.0
    %257 = vmatpush1.xpose.msra.mxu0 0.0
    %258 = vmatprep.subr.mxu0 0.0
    %259 = vmatpush1.xpose.msra.mxu0 0.0
    %260 = vmatprep.subr.mxu0 0.0
    %261 = vmatpush1.xpose.msra.mxu0 0.0
    %262 = vmatprep.subr.mxu0 0.0
    %263 = vmatpush1.xpose.msra.mxu0 0.0
    %264 = vmatprep.subr.mxu0 0.0
    %265 = vmatpush1.xpose.msra.mxu0 0.0
    %266 = vmatprep.subr.mxu0 0.0
    %267 = vmatpush1.xpose.msra.mxu0 0.0
    %268 = vmatprep.subr.mxu0 0.0
    %269 = vmatpush1.xpose.msra.mxu0 0.0
    %270 = vmatprep.subr.mxu0 0.0
    %271 = vmatpush1.xpose.msra.mxu0 0.0
    %272 = vmatprep.subr.mxu0 0.0
    %273 = vmatpush1.xpose.msra.mxu0 0.0
    %274 = vmatprep.subr.mxu0 0.0
    %275 = vmatpush1.xpose.msra.mxu0 0.0
    %276 = vmatprep.subr.mxu0 0.0
    %277 = vmatpush1.xpose.msra.mxu0 0.0
    %278 = vmatprep.subr.mxu0 0.0
    %279 = vmatpush1.xpose.msra.mxu0 0.0
    %280 = vmatprep.subr.mxu0 0.0
    %281 = vmatpush1.xpose.msra.mxu0 0.0
    %282 = vmatprep.subr.mxu0 0.0
    %283 = vmatpush1.xpose.msra.mxu0 0.0
    %284 = vmatprep.subr.mxu0 0.0
    %285 = vmatpush1.xpose.msra.mxu0 0.0
    %286 = vmatprep.subr.mxu0 0.0
    %287 = vmatpush1.xpose.msra.mxu0 0.0
    %288 = vmatprep.subr.mxu0 0.0
    %289 = vmatpush1.xpose.msra.mxu0 0.0
    %290 = vmatprep.subr.mxu0 0.0
    %291 = vmatpush1.xpose.msra.mxu0 0.0
    %292 = vmatprep.subr.mxu0 0.0
    %293 = vmatpush1.xpose.msra.mxu0 0.0
    %294 = vmatprep.subr.mxu0 0.0
    %295 = vmatpush1.xpose.msra.mxu0 0.0
    %296 = vmatprep.subr.mxu0 0.0
    %297 = vmatpush1.xpose.msra.mxu0 0.0
    %298 = vmatprep.subr.mxu0 0.0
    %299 = vmatpush1.xpose.msra.mxu0 0.0
    %300 = vmatprep.subr.mxu0 0.0
    %301 = vmatpush1.xpose.msra.mxu0 0.0
    %302 = vmatprep.subr.mxu0 0.0
    %303 = vmatpush1.xpose.msra.mxu0 0.0
    %304 = vmatprep.subr.mxu0 0.0
    %305 = vmatpush1.xpose.msra.mxu0 0.0
    %306 = vmatprep.subr.mxu0 0.0
    %307 = vmatpush1.xpose.msra.mxu0 0.0
    %308 = vmatprep.subr.mxu0 0.0
    %309 = vmatpush1.xpose.msra.mxu0 0.0
    %310 = vmatprep.subr.mxu0 0.0
    %311 = vmatpush1.xpose.msra.mxu0 0.0
    %312 = vmatprep.subr.mxu0 0.0
    %313 = vmatpush1.xpose.msra.mxu0 0.0
    %314 = vmatprep.mubr.f32.mxu0 0.0
    %315 = vmatmul.mubr.f32.gmra.mrb[0].mxu0 %v246
    %v316 = vpop.f32.mrb[0].mxu0
    %v317 = vadd.f32 0.0, %v316
    %v318 = vpop.f32.mrb[0].mxu0
    %319 = vdwg.mxu0
    %v320 = vmul.f32 %v240, 0.35355338
    %v321 = vmul.f32 %v317, 0.35355338
    %v322 = vsel %vm168, %v320, -inf
    %323 = vmax.xlane.f32.xlu0 %v322
    %v324 = vpop.xlane.xlu0 %323
    %v325 = vsel %vm168, %v321, -inf
    %326 = vmax.xlane.f32.xlu0 %v325
    %v327 = vpop.xlane.xlu0 %326
    %v328 = vsub.f32 %v320, %v324
    %v329 = vsub.f32 %v321, %v327
    %v330 = vmul.f32 %v328, 1.442695
    %v331 = vpow.pop %v330
    %v332 = vmul.f32 %v329, 1.442695
    %v333 = vpow.pop %v332
    %v334 = vsel %vm168, %v331, 0.0
    %335 = vadd.xlane.f32.xlu0 %v334
    %v336 = vpop.xlane.xlu0 %335
    %v337 = vsel %vm168, %v333, 0.0
    %338 = vadd.xlane.f32.xlu0 %v337
    %v339 = vpop.xlane.xlu0 %338
    %v340 = vrcp.pop %v336
    %v341 = vrcp.pop %v339
    %v342 = vmul.f32 %v331, %v340
    %v343 = vmul.f32 %v333, %v341
    %344 = vrot.lane.b32.xlu0 %v157, 64
    %v345 = vpop.permute.xlu0 %344
    %v348 = vsel %vm168, %v342, 0
    %350 = vmatprep.subr.mxu0 0.0
    %351 = vmatpush1.msra.mxu0 %v345
    %352 = vmatprep.subr.mxu0 0.0
    %353 = vmatpush1.msra.mxu0 0.0
    %354 = vmatprep.subr.mxu0 0.0
    %355 = vmatpush1.msra.mxu0 0.0
    %356 = vmatprep.subr.mxu0 0.0
    %357 = vmatpush1.msra.mxu0 0.0
    %358 = vmatprep.subr.mxu0 0.0
    %359 = vmatpush1.msra.mxu0 0.0
    %360 = vmatprep.subr.mxu0 0.0
    %361 = vmatpush1.msra.mxu0 0.0
    %362 = vmatprep.subr.mxu0 0.0
    %363 = vmatpush1.msra.mxu0 0.0
    %364 = vmatprep.subr.mxu0 0.0
    %365 = vmatpush1.msra.mxu0 0.0
    %366 = vmatprep.subr.mxu0 0.0
    %367 = vmatpush1.msra.mxu0 0.0
    %368 = vmatprep.subr.mxu0 0.0
    %369 = vmatpush1.msra.mxu0 0.0
    %370 = vmatprep.subr.mxu0 0.0
    %371 = vmatpush1.msra.mxu0 0.0
    %372 = vmatprep.subr.mxu0 0.0
    %373 = vmatpush1.msra.mxu0 0.0
    %374 = vmatprep.subr.mxu0 0.0
    %375 = vmatpush1.msra.mxu0 0.0
    %376 = vmatprep.subr.mxu0 0.0
    %377 = vmatpush1.msra.mxu0 0.0
    %378 = vmatprep.subr.mxu0 0.0
    %379 = vmatpush1.msra.mxu0 0.0
    %380 = vmatprep.subr.mxu0 0.0
    %381 = vmatpush1.msra.mxu0 0.0
    %382 = vmatprep.subr.mxu0 0.0
    %383 = vmatpush1.msra.mxu0 0.0
    %384 = vmatprep.subr.mxu0 0.0
    %385 = vmatpush1.msra.mxu0 0.0
    %386 = vmatprep.subr.mxu0 0.0
    %387 = vmatpush1.msra.mxu0 0.0
    %388 = vmatprep.subr.mxu0 0.0
    %389 = vmatpush1.msra.mxu0 0.0
    %390 = vmatprep.subr.mxu0 0.0
    %391 = vmatpush1.msra.mxu0 0.0
    %392 = vmatprep.subr.mxu0 0.0
    %393 = vmatpush1.msra.mxu0 0.0
    %394 = vmatprep.subr.mxu0 0.0
    %395 = vmatpush1.msra.mxu0 0.0
    %396 = vmatprep.subr.mxu0 0.0
    %397 = vmatpush1.msra.mxu0 0.0
    %398 = vmatprep.subr.mxu0 0.0
    %399 = vmatpush1.msra.mxu0 0.0
    %400 = vmatprep.subr.mxu0 0.0
    %401 = vmatpush1.msra.mxu0 0.0
    %402 = vmatprep.subr.mxu0 0.0
    %403 = vmatpush1.msra.mxu0 0.0
    %404 = vmatprep.subr.mxu0 0.0
    %405 = vmatpush1.msra.mxu0 0.0
    %406 = vmatprep.subr.mxu0 0.0
    %407 = vmatpush1.msra.mxu0 0.0
    %408 = vmatprep.subr.mxu0 0.0
    %409 = vmatpush1.msra.mxu0 0.0
    %410 = vmatprep.subr.mxu0 0.0
    %411 = vmatpush1.msra.mxu0 0.0
    %412 = vmatprep.subr.mxu0 0.0
    %413 = vmatpush1.msra.mxu0 0.0
    %414 = vmatprep.mubr.f32.mxu0 0.0
    %415 = vmatmul.mubr.f32.gmra.mrb[0].mxu0 %v348
    %v416 = vpop.f32.mrb[0].mxu0
    %v417 = vadd.f32 0.0, %v416
    %v418 = vpop.f32.mrb[0].mxu0
    %419 = vdwg.mxu0
    %420 = vrot.lane.b32.xlu0 %v162, 64
    %v421 = vpop.permute.xlu0 %420
    %v424 = vsel %vm168, %v343, 0
    %426 = vmatprep.subr.mxu0 0.0
    %427 = vmatpush1.msra.mxu0 %v421
    %428 = vmatprep.subr.mxu0 0.0
    %429 = vmatpush1.msra.mxu0 0.0
    %430 = vmatprep.subr.mxu0 0.0
    %431 = vmatpush1.msra.mxu0 0.0
    %432 = vmatprep.subr.mxu0 0.0
    %433 = vmatpush1.msra.mxu0 0.0
    %434 = vmatprep.subr.mxu0 0.0
    %435 = vmatpush1.msra.mxu0 0.0
    %436 = vmatprep.subr.mxu0 0.0
    %437 = vmatpush1.msra.mxu0 0.0
    %438 = vmatprep.subr.mxu0 0.0
    %439 = vmatpush1.msra.mxu0 0.0
    %440 = vmatprep.subr.mxu0 0.0
    %441 = vmatpush1.msra.mxu0 0.0
    %442 = vmatprep.subr.mxu0 0.0
    %443 = vmatpush1.msra.mxu0 0.0
    %444 = vmatprep.subr.mxu0 0.0
    %445 = vmatpush1.msra.mxu0 0.0
    %446 = vmatprep.subr.mxu0 0.0
    %447 = vmatpush1.msra.mxu0 0.0
    %448 = vmatprep.subr.mxu0 0.0
    %449 = vmatpush1.msra.mxu0 0.0
    %450 = vmatprep.subr.mxu0 0.0
    %451 = vmatpush1.msra.mxu0 0.0
    %452 = vmatprep.subr.mxu0 0.0
    %453 = vmatpush1.msra.mxu0 0.0
    %454 = vmatprep.subr.mxu0 0.0
    %455 = vmatpush1.msra.mxu0 0.0
    %456 = vmatprep.subr.mxu0 0.0
    %457 = vmatpush1.msra.mxu0 0.0
    %458 = vmatprep.subr.mxu0 0.0
    %459 = vmatpush1.msra.mxu0 0.0
    %460 = vmatprep.subr.mxu0 0.0
    %461 = vmatpush1.msra.mxu0 0.0
    %462 = vmatprep.subr.mxu0 0.0
    %463 = vmatpush1.msra.mxu0 0.0
    %464 = vmatprep.subr.mxu0 0.0
    %465 = vmatpush1.msra.mxu0 0.0
    %466 = vmatprep.subr.mxu0 0.0
    %467 = vmatpush1.msra.mxu0 0.0
    %468 = vmatprep.subr.mxu0 0.0
    %469 = vmatpush1.msra.mxu0 0.0
    %470 = vmatprep.subr.mxu0 0.0
    %471 = vmatpush1.msra.mxu0 0.0
    %472 = vmatprep.subr.mxu0 0.0
    %473 = vmatpush1.msra.mxu0 0.0
    %474 = vmatprep.subr.mxu0 0.0
    %475 = vmatpush1.msra.mxu0 0.0
    %476 = vmatprep.subr.mxu0 0.0
    %477 = vmatpush1.msra.mxu0 0.0
    %478 = vmatprep.subr.mxu0 0.0
    %479 = vmatpush1.msra.mxu0 0.0
    %480 = vmatprep.subr.mxu0 0.0
    %481 = vmatpush1.msra.mxu0 0.0
    %482 = vmatprep.subr.mxu0 0.0
    %483 = vmatpush1.msra.mxu0 0.0
    %484 = vmatprep.subr.mxu0 0.0
    %485 = vmatpush1.msra.mxu0 0.0
    %486 = vmatprep.subr.mxu0 0.0
    %487 = vmatpush1.msra.mxu0 0.0
    %488 = vmatprep.subr.mxu0 0.0
    %489 = vmatpush1.msra.mxu0 0.0
    %490 = vmatprep.mubr.f32.mxu0 0.0
    %491 = vmatmul.mubr.f32.gmra.mrb[0].mxu0 %v424
    %v492 = vpop.f32.mrb[0].mxu0
    %v493 = vadd.f32 0.0, %v492
    %v494 = vpop.f32.mrb[0].mxu0
    %495 = vdwg.mxu0
    %v496 = vld [vmem:[%s4] sm:$0xff]
    %497 = vrot.lane.b32.xlu0 %v157, 120
    %v498 = vpop.permute.xlu0 %497
    %499 = vrot.lane.b32.xlu0 %v157, 88
    %v500 = vpop.permute.xlu0 %499
    %v501 = vsel %vm168, %v498, 0
    %v503 = vsel %vm168, %v500, 0
    %505 = vmatprep.subr.mxu0 0.0
    %506 = vmatpush1.xpose.msra.mxu0 %v503
    %507 = vmatprep.subr.mxu0 0.0
    %508 = vmatpush1.xpose.msra.mxu0 0.0
    %509 = vmatprep.subr.mxu0 0.0
    %510 = vmatpush1.xpose.msra.mxu0 0.0
    %511 = vmatprep.subr.mxu0 0.0
    %512 = vmatpush1.xpose.msra.mxu0 0.0
    %513 = vmatprep.subr.mxu0 0.0
    %514 = vmatpush1.xpose.msra.mxu0 0.0
    %515 = vmatprep.subr.mxu0 0.0
    %516 = vmatpush1.xpose.msra.mxu0 0.0
    %517 = vmatprep.subr.mxu0 0.0
    %518 = vmatpush1.xpose.msra.mxu0 0.0
    %519 = vmatprep.subr.mxu0 0.0
    %520 = vmatpush1.xpose.msra.mxu0 0.0
    %521 = vmatprep.subr.mxu0 0.0
    %522 = vmatpush1.xpose.msra.mxu0 0.0
    %523 = vmatprep.subr.mxu0 0.0
    %524 = vmatpush1.xpose.msra.mxu0 0.0
    %525 = vmatprep.subr.mxu0 0.0
    %526 = vmatpush1.xpose.msra.mxu0 0.0
    %527 = vmatprep.subr.mxu0 0.0
    %528 = vmatpush1.xpose.msra.mxu0 0.0
    %529 = vmatprep.subr.mxu0 0.0
    %530 = vmatpush1.xpose.msra.mxu0 0.0
    %531 = vmatprep.subr.mxu0 0.0
    %532 = vmatpush1.xpose.msra.mxu0 0.0
    %533 = vmatprep.subr.mxu0 0.0
    %534 = vmatpush1.xpose.msra.mxu0 0.0
    %535 = vmatprep.subr.mxu0 0.0
    %536 = vmatpush1.xpose.msra.mxu0 0.0
    %537 = vmatprep.subr.mxu0 0.0
    %538 = vmatpush1.xpose.msra.mxu0 0.0
    %539 = vmatprep.subr.mxu0 0.0
    %540 = vmatpush1.xpose.msra.mxu0 0.0
    %541 = vmatprep.subr.mxu0 0.0
    %542 = vmatpush1.xpose.msra.mxu0 0.0
    %543 = vmatprep.subr.mxu0 0.0
    %544 = vmatpush1.xpose.msra.mxu0 0.0
    %545 = vmatprep.subr.mxu0 0.0
    %546 = vmatpush1.xpose.msra.mxu0 0.0
    %547 = vmatprep.subr.mxu0 0.0
    %548 = vmatpush1.xpose.msra.mxu0 0.0
    %549 = vmatprep.subr.mxu0 0.0
    %550 = vmatpush1.xpose.msra.mxu0 0.0
    %551 = vmatprep.subr.mxu0 0.0
    %552 = vmatpush1.xpose.msra.mxu0 0.0
    %553 = vmatprep.subr.mxu0 0.0
    %554 = vmatpush1.xpose.msra.mxu0 0.0
    %555 = vmatprep.subr.mxu0 0.0
    %556 = vmatpush1.xpose.msra.mxu0 0.0
    %557 = vmatprep.subr.mxu0 0.0
    %558 = vmatpush1.xpose.msra.mxu0 0.0
    %559 = vmatprep.subr.mxu0 0.0
    %560 = vmatpush1.xpose.msra.mxu0 0.0
    %561 = vmatprep.subr.mxu0 0.0
    %562 = vmatpush1.xpose.msra.mxu0 0.0
    %563 = vmatprep.subr.mxu0 0.0
    %564 = vmatpush1.xpose.msra.mxu0 0.0
    %565 = vmatprep.subr.mxu0 0.0
    %566 = vmatpush1.xpose.msra.mxu0 0.0
    %567 = vmatprep.subr.mxu0 0.0
    %568 = vmatpush1.xpose.msra.mxu0 0.0
    %569 = vmatprep.mubr.f32.mxu0 0.0
    %570 = vmatmul.mubr.f32.gmra.mrb[0].mxu0 %v501
    %v571 = vpop.f32.mrb[0].mxu0
    %v572 = vadd.f32 0.0, %v571
    %v573 = vpop.f32.mrb[0].mxu0
    %574 = vdwg.mxu0
    %575 = vrot.lane.b32.xlu0 %v162, 120
    %v576 = vpop.permute.xlu0 %575
    %577 = vrot.lane.b32.xlu0 %v162, 88
    %v578 = vpop.permute.xlu0 %577
    %v579 = vsel %vm168, %v576, 0
    %v581 = vsel %vm168, %v578, 0
    %583 = vmatprep.subr.mxu0 0.0
    %584 = vmatpush1.xpose.msra.mxu0 %v581
    %585 = vmatprep.subr.mxu0 0.0
    %586 = vmatpush1.xpose.msra.mxu0 0.0
    %587 = vmatprep.subr.mxu0 0.0
    %588 = vmatpush1.xpose.msra.mxu0 0.0
    %589 = vmatprep.subr.mxu0 0.0
    %590 = vmatpush1.xpose.msra.mxu0 0.0
    %591 = vmatprep.subr.mxu0 0.0
    %592 = vmatpush1.xpose.msra.mxu0 0.0
    %593 = vmatprep.subr.mxu0 0.0
    %594 = vmatpush1.xpose.msra.mxu0 0.0
    %595 = vmatprep.subr.mxu0 0.0
    %596 = vmatpush1.xpose.msra.mxu0 0.0
    %597 = vmatprep.subr.mxu0 0.0
    %598 = vmatpush1.xpose.msra.mxu0 0.0
    %599 = vmatprep.subr.mxu0 0.0
    %600 = vmatpush1.xpose.msra.mxu0 0.0
    %601 = vmatprep.subr.mxu0 0.0
    %602 = vmatpush1.xpose.msra.mxu0 0.0
    %603 = vmatprep.subr.mxu0 0.0
    %604 = vmatpush1.xpose.msra.mxu0 0.0
    %605 = vmatprep.subr.mxu0 0.0
    %606 = vmatpush1.xpose.msra.mxu0 0.0
    %607 = vmatprep.subr.mxu0 0.0
    %608 = vmatpush1.xpose.msra.mxu0 0.0
    %609 = vmatprep.subr.mxu0 0.0
    %610 = vmatpush1.xpose.msra.mxu0 0.0
    %611 = vmatprep.subr.mxu0 0.0
    %612 = vmatpush1.xpose.msra.mxu0 0.0
    %613 = vmatprep.subr.mxu0 0.0
    %614 = vmatpush1.xpose.msra.mxu0 0.0
    %615 = vmatprep.subr.mxu0 0.0
    %616 = vmatpush1.xpose.msra.mxu0 0.0
    %617 = vmatprep.subr.mxu0 0.0
    %618 = vmatpush1.xpose.msra.mxu0 0.0
    %619 = vmatprep.subr.mxu0 0.0
    %620 = vmatpush1.xpose.msra.mxu0 0.0
    %621 = vmatprep.subr.mxu0 0.0
    %622 = vmatpush1.xpose.msra.mxu0 0.0
    %623 = vmatprep.subr.mxu0 0.0
    %624 = vmatpush1.xpose.msra.mxu0 0.0
    %625 = vmatprep.subr.mxu0 0.0
    %626 = vmatpush1.xpose.msra.mxu0 0.0
    %627 = vmatprep.subr.mxu0 0.0
    %628 = vmatpush1.xpose.msra.mxu0 0.0
    %629 = vmatprep.subr.mxu0 0.0
    %630 = vmatpush1.xpose.msra.mxu0 0.0
    %631 = vmatprep.subr.mxu0 0.0
    %632 = vmatpush1.xpose.msra.mxu0 0.0
    %633 = vmatprep.subr.mxu0 0.0
    %634 = vmatpush1.xpose.msra.mxu0 0.0
    %635 = vmatprep.subr.mxu0 0.0
    %636 = vmatpush1.xpose.msra.mxu0 0.0
    %637 = vmatprep.subr.mxu0 0.0
    %638 = vmatpush1.xpose.msra.mxu0 0.0
    %639 = vmatprep.subr.mxu0 0.0
    %640 = vmatpush1.xpose.msra.mxu0 0.0
    %641 = vmatprep.subr.mxu0 0.0
    %642 = vmatpush1.xpose.msra.mxu0 0.0
    %643 = vmatprep.subr.mxu0 0.0
    %644 = vmatpush1.xpose.msra.mxu0 0.0
    %645 = vmatprep.subr.mxu0 0.0
    %646 = vmatpush1.xpose.msra.mxu0 0.0
    %647 = vmatprep.mubr.f32.mxu0 0.0
    %648 = vmatmul.mubr.f32.gmra.mrb[0].mxu0 %v579
    %v649 = vpop.f32.mrb[0].mxu0
    %v650 = vadd.f32 0.0, %v649
    %v651 = vpop.f32.mrb[0].mxu0
    %652 = vdwg.mxu0
    %v653 = vmul.f32 %v572, 0.35355338
    %v654 = vmul.f32 %v650, 0.35355338
    %v655 = vsel %vm168, %v653, -inf
    %656 = vmax.xlane.f32.xlu0 %v655
    %v657 = vpop.xlane.xlu0 %656
    %v658 = vsel %vm168, %v654, -inf
    %659 = vmax.xlane.f32.xlu0 %v658
    %v660 = vpop.xlane.xlu0 %659
    %v661 = vsub.f32 %v653, %v657
    %v662 = vsub.f32 %v654, %v660
    %v663 = vmul.f32 %v661, 1.442695
    %v664 = vpow.pop %v663
    %v665 = vmul.f32 %v662, 1.442695
    %v666 = vpow.pop %v665
    %v667 = vsel %vm168, %v664, 0.0
    %668 = vadd.xlane.f32.xlu0 %v667
    %v669 = vpop.xlane.xlu0 %668
    %v670 = vsel %vm168, %v666, 0.0
    %671 = vadd.xlane.f32.xlu0 %v670
    %v672 = vpop.xlane.xlu0 %671
    %v673 = vrcp.pop %v669
    %v674 = vrcp.pop %v672
    %v675 = vmul.f32 %v664, %v673
    %v676 = vmul.f32 %v666, %v674
    %677 = vrot.lane.b32.xlu0 %v157, 56
    %v678 = vpop.permute.xlu0 %677
    %v681 = vsel %vm168, %v675, 0
    %683 = vmatprep.subr.mxu0 0.0
    %684 = vmatpush1.msra.mxu0 %v678
    %685 = vmatprep.subr.mxu0 0.0
    %686 = vmatpush1.msra.mxu0 0.0
    %687 = vmatprep.subr.mxu0 0.0
    %688 = vmatpush1.msra.mxu0 0.0
    %689 = vmatprep.subr.mxu0 0.0
    %690 = vmatpush1.msra.mxu0 0.0
    %691 = vmatprep.subr.mxu0 0.0
    %692 = vmatpush1.msra.mxu0 0.0
    %693 = vmatprep.subr.mxu0 0.0
    %694 = vmatpush1.msra.mxu0 0.0
    %695 = vmatprep.subr.mxu0 0.0
    %696 = vmatpush1.msra.mxu0 0.0
    %697 = vmatprep.subr.mxu0 0.0
    %698 = vmatpush1.msra.mxu0 0.0
    %699 = vmatprep.subr.mxu0 0.0
    %700 = vmatpush1.msra.mxu0 0.0
    %701 = vmatprep.subr.mxu0 0.0
    %702 = vmatpush1.msra.mxu0 0.0
    %703 = vmatprep.subr.mxu0 0.0
    %704 = vmatpush1.msra.mxu0 0.0
    %705 = vmatprep.subr.mxu0 0.0
    %706 = vmatpush1.msra.mxu0 0.0
    %707 = vmatprep.subr.mxu0 0.0
    %708 = vmatpush1.msra.mxu0 0.0
    %709 = vmatprep.subr.mxu0 0.0
    %710 = vmatpush1.msra.mxu0 0.0
    %711 = vmatprep.subr.mxu0 0.0
    %712 = vmatpush1.msra.mxu0 0.0
    %713 = vmatprep.subr.mxu0 0.0
    %714 = vmatpush1.msra.mxu0 0.0
    %715 = vmatprep.subr.mxu0 0.0
    %716 = vmatpush1.msra.mxu0 0.0
    %717 = vmatprep.subr.mxu0 0.0
    %718 = vmatpush1.msra.mxu0 0.0
    %719 = vmatprep.subr.mxu0 0.0
    %720 = vmatpush1.msra.mxu0 0.0
    %721 = vmatprep.subr.mxu0 0.0
    %722 = vmatpush1.msra.mxu0 0.0
    %723 = vmatprep.subr.mxu0 0.0
    %724 = vmatpush1.msra.mxu0 0.0
    %725 = vmatprep.subr.mxu0 0.0
    %726 = vmatpush1.msra.mxu0 0.0
    %727 = vmatprep.subr.mxu0 0.0
    %728 = vmatpush1.msra.mxu0 0.0
    %729 = vmatprep.subr.mxu0 0.0
    %730 = vmatpush1.msra.mxu0 0.0
    %731 = vmatprep.subr.mxu0 0.0
    %732 = vmatpush1.msra.mxu0 0.0
    %733 = vmatprep.subr.mxu0 0.0
    %734 = vmatpush1.msra.mxu0 0.0
    %735 = vmatprep.subr.mxu0 0.0
    %736 = vmatpush1.msra.mxu0 0.0
    %737 = vmatprep.subr.mxu0 0.0
    %738 = vmatpush1.msra.mxu0 0.0
    %739 = vmatprep.subr.mxu0 0.0
    %740 = vmatpush1.msra.mxu0 0.0
    %741 = vmatprep.subr.mxu0 0.0
    %742 = vmatpush1.msra.mxu0 0.0
    %743 = vmatprep.subr.mxu0 0.0
    %744 = vmatpush1.msra.mxu0 0.0
    %745 = vmatprep.subr.mxu0 0.0
    %746 = vmatpush1.msra.mxu0 0.0
    %747 = vmatprep.mubr.f32.mxu0 0.0
    %748 = vmatmul.mubr.f32.gmra.mrb[0].mxu0 %v681
    %v749 = vpop.f32.mrb[0].mxu0
    %v750 = vadd.f32 0.0, %v749
    %v751 = vpop.f32.mrb[0].mxu0
    %752 = vdwg.mxu0
    %753 = vrot.lane.b32.xlu0 %v162, 56
    %v754 = vpop.permute.xlu0 %753
    %v757 = vsel %vm168, %v676, 0
    %759 = vmatprep.subr.mxu0 0.0
    %760 = vmatpush1.msra.mxu0 %v754
    %761 = vmatprep.subr.mxu0 0.0
    %762 = vmatpush1.msra.mxu0 0.0
    %763 = vmatprep.subr.mxu0 0.0
    %764 = vmatpush1.msra.mxu0 0.0
    %765 = vmatprep.subr.mxu0 0.0
    %766 = vmatpush1.msra.mxu0 0.0
    %767 = vmatprep.subr.mxu0 0.0
    %768 = vmatpush1.msra.mxu0 0.0
    %769 = vmatprep.subr.mxu0 0.0
    %770 = vmatpush1.msra.mxu0 0.0
    %771 = vmatprep.subr.mxu0 0.0
    %772 = vmatpush1.msra.mxu0 0.0
    %773 = vmatprep.subr.mxu0 0.0
    %774 = vmatpush1.msra.mxu0 0.0
    %775 = vmatprep.subr.mxu0 0.0
    %776 = vmatpush1.msra.mxu0 0.0
    %777 = vmatprep.subr.mxu0 0.0
    %778 = vmatpush1.msra.mxu0 0.0
    %779 = vmatprep.subr.mxu0 0.0
    %780 = vmatpush1.msra.mxu0 0.0
    %781 = vmatprep.subr.mxu0 0.0
    %782 = vmatpush1.msra.mxu0 0.0
    %783 = vmatprep.subr.mxu0 0.0
    %784 = vmatpush1.msra.mxu0 0.0
    %785 = vmatprep.subr.mxu0 0.0
    %786 = vmatpush1.msra.mxu0 0.0
    %787 = vmatprep.subr.mxu0 0.0
    %788 = vmatpush1.msra.mxu0 0.0
    %789 = vmatprep.subr.mxu0 0.0
    %790 = vmatpush1.msra.mxu0 0.0
    %791 = vmatprep.subr.mxu0 0.0
    %792 = vmatpush1.msra.mxu0 0.0
    %793 = vmatprep.subr.mxu0 0.0
    %794 = vmatpush1.msra.mxu0 0.0
    %795 = vmatprep.subr.mxu0 0.0
    %796 = vmatpush1.msra.mxu0 0.0
    %797 = vmatprep.subr.mxu0 0.0
    %798 = vmatpush1.msra.mxu0 0.0
    %799 = vmatprep.subr.mxu0 0.0
    %800 = vmatpush1.msra.mxu0 0.0
    %801 = vmatprep.subr.mxu0 0.0
    %802 = vmatpush1.msra.mxu0 0.0
    %803 = vmatprep.subr.mxu0 0.0
    %804 = vmatpush1.msra.mxu0 0.0
    %805 = vmatprep.subr.mxu0 0.0
    %806 = vmatpush1.msra.mxu0 0.0
    %807 = vmatprep.subr.mxu0 0.0
    %808 = vmatpush1.msra.mxu0 0.0
    %809 = vmatprep.subr.mxu0 0.0
    %810 = vmatpush1.msra.mxu0 0.0
    %811 = vmatprep.subr.mxu0 0.0
    %812 = vmatpush1.msra.mxu0 0.0
    %813 = vmatprep.subr.mxu0 0.0
    %814 = vmatpush1.msra.mxu0 0.0
    %815 = vmatprep.subr.mxu0 0.0
    %816 = vmatpush1.msra.mxu0 0.0
    %817 = vmatprep.subr.mxu0 0.0
    %818 = vmatpush1.msra.mxu0 0.0
    %819 = vmatprep.subr.mxu0 0.0
    %820 = vmatpush1.msra.mxu0 0.0
    %821 = vmatprep.subr.mxu0 0.0
    %822 = vmatpush1.msra.mxu0 0.0
    %823 = vmatprep.mubr.f32.mxu0 0.0
    %824 = vmatmul.mubr.f32.gmra.mrb[0].mxu0 %v757
    %v825 = vpop.f32.mrb[0].mxu0
    %v826 = vadd.f32 0.0, %v825
    %v827 = vpop.f32.mrb[0].mxu0
    %828 = vdwg.mxu0
    %v829 = vld [vmem:[%s4 + $0x8] sm:$0xff]
    %v831 = vsel %vm168, %v750, 0
    %v834 = vsel %vm168, %v826, 0
    %836 = vmatprep.subr.mxu0 0.0
    %837 = vmatpush1.msra.mxu0 %v829
    %838 = vmatprep.subr.mxu0 0.0
    %839 = vmatpush1.msra.mxu0 0.0
    %840 = vmatprep.subr.mxu0 0.0
    %841 = vmatpush1.msra.mxu0 0.0
    %842 = vmatprep.subr.mxu0 0.0
    %843 = vmatpush1.msra.mxu0 0.0
    %844 = vmatprep.subr.mxu0 0.0
    %845 = vmatpush1.msra.mxu0 0.0
    %846 = vmatprep.subr.mxu0 0.0
    %847 = vmatpush1.msra.mxu0 0.0
    %848 = vmatprep.subr.mxu0 0.0
    %849 = vmatpush1.msra.mxu0 0.0
    %850 = vmatprep.subr.mxu0 0.0
    %851 = vmatpush1.msra.mxu0 0.0
    %852 = vmatprep.subr.mxu0 0.0
    %853 = vmatpush1.msra.mxu0 0.0
    %854 = vmatprep.subr.mxu0 0.0
    %855 = vmatpush1.msra.mxu0 0.0
    %856 = vmatprep.subr.mxu0 0.0
    %857 = vmatpush1.msra.mxu0 0.0
    %858 = vmatprep.subr.mxu0 0.0
    %859 = vmatpush1.msra.mxu0 0.0
    %860 = vmatprep.subr.mxu0 0.0
    %861 = vmatpush1.msra.mxu0 0.0
    %862 = vmatprep.subr.mxu0 0.0
    %863 = vmatpush1.msra.mxu0 0.0
    %864 = vmatprep.subr.mxu0 0.0
    %865 = vmatpush1.msra.mxu0 0.0
    %866 = vmatprep.subr.mxu0 0.0
    %867 = vmatpush1.msra.mxu0 0.0
    %868 = vmatprep.subr.mxu0 0.0
    %869 = vmatpush1.msra.mxu0 0.0
    %870 = vmatprep.subr.mxu0 0.0
    %871 = vmatpush1.msra.mxu0 0.0
    %872 = vmatprep.subr.mxu0 0.0
    %873 = vmatpush1.msra.mxu0 0.0
    %874 = vmatprep.subr.mxu0 0.0
    %875 = vmatpush1.msra.mxu0 0.0
    %876 = vmatprep.subr.mxu0 0.0
    %877 = vmatpush1.msra.mxu0 0.0
    %878 = vmatprep.subr.mxu0 0.0
    %879 = vmatpush1.msra.mxu0 0.0
    %880 = vmatprep.subr.mxu0 0.0
    %881 = vmatpush1.msra.mxu0 0.0
    %882 = vmatprep.subr.mxu0 0.0
    %883 = vmatpush1.msra.mxu0 0.0
    %884 = vmatprep.subr.mxu0 0.0
    %885 = vmatpush1.msra.mxu0 0.0
    %886 = vmatprep.subr.mxu0 0.0
    %887 = vmatpush1.msra.mxu0 0.0
    %888 = vmatprep.subr.mxu0 0.0
    %889 = vmatpush1.msra.mxu0 0.0
    %890 = vmatprep.subr.mxu0 0.0
    %891 = vmatpush1.msra.mxu0 0.0
    %892 = vmatprep.subr.mxu0 0.0
    %893 = vmatpush1.msra.mxu0 0.0
    %894 = vmatprep.subr.mxu0 0.0
    %895 = vmatpush1.msra.mxu0 0.0
    %896 = vmatprep.subr.mxu0 0.0
    %897 = vmatpush1.msra.mxu0 0.0
    %898 = vmatprep.subr.mxu0 0.0
    %899 = vmatpush1.msra.mxu0 0.0
    %900 = vmatprep.mubr.f32.mxu0 0.0
    %901 = vmatmul.mubr.f32.gmra.mrb[0].mxu0 %v831
    %v902 = vpop.f32.mrb[0].mxu0
    %v903 = vadd.f32 0.0, %v902
    %v904 = vpop.f32.mrb[0].mxu0
    %905 = vmatprep.mubr.f32.mxu0 0.0
    %906 = vmatmul.mubr.f32.gmra.mrb[0].mxu0 %v834
    %v907 = vpop.f32.mrb[0].mxu0
    %v908 = vadd.f32 0.0, %v907
    %v909 = vpop.f32.mrb[0].mxu0
    %910 = vdwg.mxu0
    %v912 = vsel %vm168, %v417, 0
    %v915 = vsel %vm168, %v493, 0
    %917 = vmatprep.subr.mxu0 0.0
    %918 = vmatpush1.msra.mxu0 %v496
    %919 = vmatprep.subr.mxu0 0.0
    %920 = vmatpush1.msra.mxu0 0.0
    %921 = vmatprep.subr.mxu0 0.0
    %922 = vmatpush1.msra.mxu0 0.0
    %923 = vmatprep.subr.mxu0 0.0
    %924 = vmatpush1.msra.mxu0 0.0
    %925 = vmatprep.subr.mxu0 0.0
    %926 = vmatpush1.msra.mxu0 0.0
    %927 = vmatprep.subr.mxu0 0.0
    %928 = vmatpush1.msra.mxu0 0.0
    %929 = vmatprep.subr.mxu0 0.0
    %930 = vmatpush1.msra.mxu0 0.0
    %931 = vmatprep.subr.mxu0 0.0
    %932 = vmatpush1.msra.mxu0 0.0
    %933 = vmatprep.subr.mxu0 0.0
    %934 = vmatpush1.msra.mxu0 0.0
    %935 = vmatprep.subr.mxu0 0.0
    %936 = vmatpush1.msra.mxu0 0.0
    %937 = vmatprep.subr.mxu0 0.0
    %938 = vmatpush1.msra.mxu0 0.0
    %939 = vmatprep.subr.mxu0 0.0
    %940 = vmatpush1.msra.mxu0 0.0
    %941 = vmatprep.subr.mxu0 0.0
    %942 = vmatpush1.msra.mxu0 0.0
    %943 = vmatprep.subr.mxu0 0.0
    %944 = vmatpush1.msra.mxu0 0.0
    %945 = vmatprep.subr.mxu0 0.0
    %946 = vmatpush1.msra.mxu0 0.0
    %947 = vmatprep.subr.mxu0 0.0
    %948 = vmatpush1.msra.mxu0 0.0
    %949 = vmatprep.subr.mxu0 0.0
    %950 = vmatpush1.msra.mxu0 0.0
    %951 = vmatprep.subr.mxu0 0.0
    %952 = vmatpush1.msra.mxu0 0.0
    %953 = vmatprep.subr.mxu0 0.0
    %954 = vmatpush1.msra.mxu0 0.0
    %955 = vmatprep.subr.mxu0 0.0
    %956 = vmatpush1.msra.mxu0 0.0
    %957 = vmatprep.subr.mxu0 0.0
    %958 = vmatpush1.msra.mxu0 0.0
    %959 = vmatprep.subr.mxu0 0.0
    %960 = vmatpush1.msra.mxu0 0.0
    %961 = vmatprep.subr.mxu0 0.0
    %962 = vmatpush1.msra.mxu0 0.0
    %963 = vmatprep.subr.mxu0 0.0
    %964 = vmatpush1.msra.mxu0 0.0
    %965 = vmatprep.subr.mxu0 0.0
    %966 = vmatpush1.msra.mxu0 0.0
    %967 = vmatprep.subr.mxu0 0.0
    %968 = vmatpush1.msra.mxu0 0.0
    %969 = vmatprep.subr.mxu0 0.0
    %970 = vmatpush1.msra.mxu0 0.0
    %971 = vmatprep.subr.mxu0 0.0
    %972 = vmatpush1.msra.mxu0 0.0
    %973 = vmatprep.subr.mxu0 0.0
    %974 = vmatpush1.msra.mxu0 0.0
    %975 = vmatprep.subr.mxu0 0.0
    %976 = vmatpush1.msra.mxu0 0.0
    %977 = vmatprep.subr.mxu0 0.0
    %978 = vmatpush1.msra.mxu0 0.0
    %979 = vmatprep.subr.mxu0 0.0
    %980 = vmatpush1.msra.mxu0 0.0
    %981 = vmatprep.mubr.f32.mxu0 0.0
    %982 = vmatmul.mubr.f32.gmra.mrb[0].mxu0 %v912
    %v983 = vpop.f32.mrb[0].mxu0
    %v984 = vadd.f32 %v903, %v983
    %v985 = vpop.f32.mrb[0].mxu0
    %986 = vmatprep.mubr.f32.mxu0 0.0
    %987 = vmatmul.mubr.f32.gmra.mrb[0].mxu0 %v915
    %v988 = vpop.f32.mrb[0].mxu0
    %v989 = vadd.f32 %v908, %v988
    %v990 = vpop.f32.mrb[0].mxu0
    %991 = vdwg.mxu0
    %992 = vrot.lane.b32.xlu0 %v157, 112
    %v993 = vpop.permute.xlu0 %992
    %994 = vrot.lane.b32.xlu0 %v157, 80
    %v995 = vpop.permute.xlu0 %994
    %v996 = vsel %vm168, %v993, 0
    %v998 = vsel %vm168, %v995, 0
    %1000 = vmatprep.subr.mxu0 0.0
    %1001 = vmatpush1.xpose.msra.mxu0 %v998
    %1002 = vmatprep.subr.mxu0 0.0
    %1003 = vmatpush1.xpose.msra.mxu0 0.0
    %1004 = vmatprep.subr.mxu0 0.0
    %1005 = vmatpush1.xpose.msra.mxu0 0.0
    %1006 = vmatprep.subr.mxu0 0.0
    %1007 = vmatpush1.xpose.msra.mxu0 0.0
    %1008 = vmatprep.subr.mxu0 0.0
    %1009 = vmatpush1.xpose.msra.mxu0 0.0
    %1010 = vmatprep.subr.mxu0 0.0
    %1011 = vmatpush1.xpose.msra.mxu0 0.0
    %1012 = vmatprep.subr.mxu0 0.0
    %1013 = vmatpush1.xpose.msra.mxu0 0.0
    %1014 = vmatprep.subr.mxu0 0.0
    %1015 = vmatpush1.xpose.msra.mxu0 0.0
    %1016 = vmatprep.subr.mxu0 0.0
    %1017 = vmatpush1.xpose.msra.mxu0 0.0
    %1018 = vmatprep.subr.mxu0 0.0
    %1019 = vmatpush1.xpose.msra.mxu0 0.0
    %1020 = vmatprep.subr.mxu0 0.0
    %1021 = vmatpush1.xpose.msra.mxu0 0.0
    %1022 = vmatprep.subr.mxu0 0.0
    %1023 = vmatpush1.xpose.msra.mxu0 0.0
    %1024 = vmatprep.subr.mxu0 0.0
    %1025 = vmatpush1.xpose.msra.mxu0 0.0
    %1026 = vmatprep.subr.mxu0 0.0
    %1027 = vmatpush1.xpose.msra.mxu0 0.0
    %1028 = vmatprep.subr.mxu0 0.0
    %1029 = vmatpush1.xpose.msra.mxu0 0.0
    %1030 = vmatprep.subr.mxu0 0.0
    %1031 = vmatpush1.xpose.msra.mxu0 0.0
    %1032 = vmatprep.subr.mxu0 0.0
    %1033 = vmatpush1.xpose.msra.mxu0 0.0
    %1034 = vmatprep.subr.mxu0 0.0
    %1035 = vmatpush1.xpose.msra.mxu0 0.0
    %1036 = vmatprep.subr.mxu0 0.0
    %1037 = vmatpush1.xpose.msra.mxu0 0.0
    %1038 = vmatprep.subr.mxu0 0.0
    %1039 = vmatpush1.xpose.msra.mxu0 0.0
    %1040 = vmatprep.subr.mxu0 0.0
    %1041 = vmatpush1.xpose.msra.mxu0 0.0
    %1042 = vmatprep.subr.mxu0 0.0
    %1043 = vmatpush1.xpose.msra.mxu0 0.0
    %1044 = vmatprep.subr.mxu0 0.0
    %1045 = vmatpush1.xpose.msra.mxu0 0.0
    %1046 = vmatprep.subr.mxu0 0.0
    %1047 = vmatpush1.xpose.msra.mxu0 0.0
    %1048 = vmatprep.subr.mxu0 0.0
    %1049 = vmatpush1.xpose.msra.mxu0 0.0
    %1050 = vmatprep.subr.mxu0 0.0
    %1051 = vmatpush1.xpose.msra.mxu0 0.0
    %1052 = vmatprep.subr.mxu0 0.0
    %1053 = vmatpush1.xpose.msra.mxu0 0.0
    %1054 = vmatprep.subr.mxu0 0.0
    %1055 = vmatpush1.xpose.msra.mxu0 0.0
    %1056 = vmatprep.subr.mxu0 0.0
    %1057 = vmatpush1.xpose.msra.mxu0 0.0
    %1058 = vmatprep.subr.mxu0 0.0
    %1059 = vmatpush1.xpose.msra.mxu0 0.0
    %1060 = vmatprep.subr.mxu0 0.0
    %1061 = vmatpush1.xpose.msra.mxu0 0.0
    %1062 = vmatprep.subr.mxu0 0.0
    %1063 = vmatpush1.xpose.msra.mxu0 0.0
    %1064 = vmatprep.mubr.f32.mxu0 0.0
    %1065 = vmatmul.mubr.f32.gmra.mrb[0].mxu0 %v996
    %v1066 = vpop.f32.mrb[0].mxu0
    %v1067 = vadd.f32 0.0, %v1066
    %v1068 = vpop.f32.mrb[0].mxu0
    %1069 = vdwg.mxu0
    %1070 = vrot.lane.b32.xlu0 %v162, 112
    %v1071 = vpop.permute.xlu0 %1070
    %1072 = vrot.lane.b32.xlu0 %v162, 80
    %v1073 = vpop.permute.xlu0 %1072
    %v1074 = vsel %vm168, %v1071, 0
    %v1076 = vsel %vm168, %v1073, 0
    %1078 = vmatprep.subr.mxu0 0.0
    %1079 = vmatpush1.xpose.msra.mxu0 %v1076
    %1080 = vmatprep.subr.mxu0 0.0
    %1081 = vmatpush1.xpose.msra.mxu0 0.0
    %1082 = vmatprep.subr.mxu0 0.0
    %1083 = vmatpush1.xpose.msra.mxu0 0.0
    %1084 = vmatprep.subr.mxu0 0.0
    %1085 = vmatpush1.xpose.msra.mxu0 0.0
    %1086 = vmatprep.subr.mxu0 0.0
    %1087 = vmatpush1.xpose.msra.mxu0 0.0
    %1088 = vmatprep.subr.mxu0 0.0
    %1089 = vmatpush1.xpose.msra.mxu0 0.0
    %1090 = vmatprep.subr.mxu0 0.0
    %1091 = vmatpush1.xpose.msra.mxu0 0.0
    %1092 = vmatprep.subr.mxu0 0.0
    %1093 = vmatpush1.xpose.msra.mxu0 0.0
    %1094 = vmatprep.subr.mxu0 0.0
    %1095 = vmatpush1.xpose.msra.mxu0 0.0
    %1096 = vmatprep.subr.mxu0 0.0
    %1097 = vmatpush1.xpose.msra.mxu0 0.0
    %1098 = vmatprep.subr.mxu0 0.0
    %1099 = vmatpush1.xpose.msra.mxu0 0.0
    %1100 = vmatprep.subr.mxu0 0.0
    %1101 = vmatpush1.xpose.msra.mxu0 0.0
    %1102 = vmatprep.subr.mxu0 0.0
    %1103 = vmatpush1.xpose.msra.mxu0 0.0
    %1104 = vmatprep.subr.mxu0 0.0
    %1105 = vmatpush1.xpose.msra.mxu0 0.0
    %1106 = vmatprep.subr.mxu0 0.0
    %1107 = vmatpush1.xpose.msra.mxu0 0.0
    %1108 = vmatprep.subr.mxu0 0.0
    %1109 = vmatpush1.xpose.msra.mxu0 0.0
    %1110 = vmatprep.subr.mxu0 0.0
    %1111 = vmatpush1.xpose.msra.mxu0 0.0
    %1112 = vmatprep.subr.mxu0 0.0
    %1113 = vmatpush1.xpose.msra.mxu0 0.0
    %1114 = vmatprep.subr.mxu0 0.0
    %1115 = vmatpush1.xpose.msra.mxu0 0.0
    %1116 = vmatprep.subr.mxu0 0.0
    %1117 = vmatpush1.xpose.msra.mxu0 0.0
    %1118 = vmatprep.subr.mxu0 0.0
    %1119 = vmatpush1.xpose.msra.mxu0 0.0
    %1120 = vmatprep.subr.mxu0 0.0
    %1121 = vmatpush1.xpose.msra.mxu0 0.0
    %1122 = vmatprep.subr.mxu0 0.0
    %1123 = vmatpush1.xpose.msra.mxu0 0.0
    %1124 = vmatprep.subr.mxu0 0.0
    %1125 = vmatpush1.xpose.msra.mxu0 0.0
    %1126 = vmatprep.subr.mxu0 0.0
    %1127 = vmatpush1.xpose.msra.mxu0 0.0
    %1128 = vmatprep.subr.mxu0 0.0
    %1129 = vmatpush1.xpose.msra.mxu0 0.0
    %1130 = vmatprep.subr.mxu0 0.0
    %1131 = vmatpush1.xpose.msra.mxu0 0.0
    %1132 = vmatprep.subr.mxu0 0.0
    %1133 = vmatpush1.xpose.msra.mxu0 0.0
    %1134 = vmatprep.subr.mxu0 0.0
    %1135 = vmatpush1.xpose.msra.mxu0 0.0
    %1136 = vmatprep.subr.mxu0 0.0
    %1137 = vmatpush1.xpose.msra.mxu0 0.0
    %1138 = vmatprep.subr.mxu0 0.0
    %1139 = vmatpush1.xpose.msra.mxu0 0.0
    %1140 = vmatprep.subr.mxu0 0.0
    %1141 = vmatpush1.xpose.msra.mxu0 0.0
    %1142 = vmatprep.mubr.f32.mxu0 0.0
    %1143 = vmatmul.mubr.f32.gmra.mrb[0].mxu0 %v1074
    %v1144 = vpop.f32.mrb[0].mxu0
    %v1145 = vadd.f32 0.0, %v1144
    %v1146 = vpop.f32.mrb[0].mxu0
    %1147 = vdwg.mxu0
    %v1148 = vmul.f32 %v1067, 0.35355338
    %v1149 = vmul.f32 %v1145, 0.35355338
    %v1150 = vsel %vm168, %v1148, -inf
    %1151 = vmax.xlane.f32.xlu0 %v1150
    %v1152 = vpop.xlane.xlu0 %1151
    %v1153 = vsel %vm168, %v1149, -inf
    %1154 = vmax.xlane.f32.xlu0 %v1153
    %v1155 = vpop.xlane.xlu0 %1154
    %v1156 = vsub.f32 %v1148, %v1152
    %v1157 = vsub.f32 %v1149, %v1155
    %v1158 = vmul.f32 %v1156, 1.442695
    %v1159 = vpow.pop %v1158
    %v1160 = vmul.f32 %v1157, 1.442695
    %v1161 = vpow.pop %v1160
    %v1162 = vsel %vm168, %v1159, 0.0
    %1163 = vadd.xlane.f32.xlu0 %v1162
    %v1164 = vpop.xlane.xlu0 %1163
    %v1165 = vsel %vm168, %v1161, 0.0
    %1166 = vadd.xlane.f32.xlu0 %v1165
    %v1167 = vpop.xlane.xlu0 %1166
    %v1168 = vrcp.pop %v1164
    %v1169 = vrcp.pop %v1167
    %v1170 = vmul.f32 %v1159, %v1168
    %v1171 = vmul.f32 %v1161, %v1169
    %1172 = vrot.lane.b32.xlu0 %v157, 48
    %v1173 = vpop.permute.xlu0 %1172
    %v1176 = vsel %vm168, %v1170, 0
    %1178 = vmatprep.subr.mxu0 0.0
    %1179 = vmatpush1.msra.mxu0 %v1173
    %1180 = vmatprep.subr.mxu0 0.0
    %1181 = vmatpush1.msra.mxu0 0.0
    %1182 = vmatprep.subr.mxu0 0.0
    %1183 = vmatpush1.msra.mxu0 0.0
    %1184 = vmatprep.subr.mxu0 0.0
    %1185 = vmatpush1.msra.mxu0 0.0
    %1186 = vmatprep.subr.mxu0 0.0
    %1187 = vmatpush1.msra.mxu0 0.0
    %1188 = vmatprep.subr.mxu0 0.0
    %1189 = vmatpush1.msra.mxu0 0.0
    %1190 = vmatprep.subr.mxu0 0.0
    %1191 = vmatpush1.msra.mxu0 0.0
    %1192 = vmatprep.subr.mxu0 0.0
    %1193 = vmatpush1.msra.mxu0 0.0
    %1194 = vmatprep.subr.mxu0 0.0
    %1195 = vmatpush1.msra.mxu0 0.0
    %1196 = vmatprep.subr.mxu0 0.0
    %1197 = vmatpush1.msra.mxu0 0.0
    %1198 = vmatprep.subr.mxu0 0.0
    %1199 = vmatpush1.msra.mxu0 0.0
    %1200 = vmatprep.subr.mxu0 0.0
    %1201 = vmatpush1.msra.mxu0 0.0
    %1202 = vmatprep.subr.mxu0 0.0
    %1203 = vmatpush1.msra.mxu0 0.0
    %1204 = vmatprep.subr.mxu0 0.0
    %1205 = vmatpush1.msra.mxu0 0.0
    %1206 = vmatprep.subr.mxu0 0.0
    %1207 = vmatpush1.msra.mxu0 0.0
    %1208 = vmatprep.subr.mxu0 0.0
    %1209 = vmatpush1.msra.mxu0 0.0
    %1210 = vmatprep.subr.mxu0 0.0
    %1211 = vmatpush1.msra.mxu0 0.0
    %1212 = vmatprep.subr.mxu0 0.0
    %1213 = vmatpush1.msra.mxu0 0.0
    %1214 = vmatprep.subr.mxu0 0.0
    %1215 = vmatpush1.msra.mxu0 0.0
    %1216 = vmatprep.subr.mxu0 0.0
    %1217 = vmatpush1.msra.mxu0 0.0
    %1218 = vmatprep.subr.mxu0 0.0
    %1219 = vmatpush1.msra.mxu0 0.0
    %1220 = vmatprep.subr.mxu0 0.0
    %1221 = vmatpush1.msra.mxu0 0.0
    %1222 = vmatprep.subr.mxu0 0.0
    %1223 = vmatpush1.msra.mxu0 0.0
    %1224 = vmatprep.subr.mxu0 0.0
    %1225 = vmatpush1.msra.mxu0 0.0
    %1226 = vmatprep.subr.mxu0 0.0
    %1227 = vmatpush1.msra.mxu0 0.0
    %1228 = vmatprep.subr.mxu0 0.0
    %1229 = vmatpush1.msra.mxu0 0.0
    %1230 = vmatprep.subr.mxu0 0.0
    %1231 = vmatpush1.msra.mxu0 0.0
    %1232 = vmatprep.subr.mxu0 0.0
    %1233 = vmatpush1.msra.mxu0 0.0
    %1234 = vmatprep.subr.mxu0 0.0
    %1235 = vmatpush1.msra.mxu0 0.0
    %1236 = vmatprep.subr.mxu0 0.0
    %1237 = vmatpush1.msra.mxu0 0.0
    %1238 = vmatprep.subr.mxu0 0.0
    %1239 = vmatpush1.msra.mxu0 0.0
    %1240 = vmatprep.subr.mxu0 0.0
    %1241 = vmatpush1.msra.mxu0 0.0
    %1242 = vmatprep.mubr.f32.mxu0 0.0
    %1243 = vmatmul.mubr.f32.gmra.mrb[0].mxu0 %v1176
    %v1244 = vpop.f32.mrb[0].mxu0
    %v1245 = vadd.f32 0.0, %v1244
    %v1246 = vpop.f32.mrb[0].mxu0
    %1247 = vdwg.mxu0
    %1248 = vrot.lane.b32.xlu0 %v162, 48
    %v1249 = vpop.permute.xlu0 %1248
    %v1252 = vsel %vm168, %v1171, 0
    %1254 = vmatprep.subr.mxu0 0.0
    %1255 = vmatpush1.msra.mxu0 %v1249
    %1256 = vmatprep.subr.mxu0 0.0
    %1257 = vmatpush1.msra.mxu0 0.0
    %1258 = vmatprep.subr.mxu0 0.0
    %1259 = vmatpush1.msra.mxu0 0.0
    %1260 = vmatprep.subr.mxu0 0.0
    %1261 = vmatpush1.msra.mxu0 0.0
    %1262 = vmatprep.subr.mxu0 0.0
    %1263 = vmatpush1.msra.mxu0 0.0
    %1264 = vmatprep.subr.mxu0 0.0
    %1265 = vmatpush1.msra.mxu0 0.0
    %1266 = vmatprep.subr.mxu0 0.0
    %1267 = vmatpush1.msra.mxu0 0.0
    %1268 = vmatprep.subr.mxu0 0.0
    %1269 = vmatpush1.msra.mxu0 0.0
    %1270 = vmatprep.subr.mxu0 0.0
    %1271 = vmatpush1.msra.mxu0 0.0
    %1272 = vmatprep.subr.mxu0 0.0
    %1273 = vmatpush1.msra.mxu0 0.0
    %1274 = vmatprep.subr.mxu0 0.0
    %1275 = vmatpush1.msra.mxu0 0.0
    %1276 = vmatprep.subr.mxu0 0.0
    %1277 = vmatpush1.msra.mxu0 0.0
    %1278 = vmatprep.subr.mxu0 0.0
    %1279 = vmatpush1.msra.mxu0 0.0
    %1280 = vmatprep.subr.mxu0 0.0
    %1281 = vmatpush1.msra.mxu0 0.0
    %1282 = vmatprep.subr.mxu0 0.0
    %1283 = vmatpush1.msra.mxu0 0.0
    %1284 = vmatprep.subr.mxu0 0.0
    %1285 = vmatpush1.msra.mxu0 0.0
    %1286 = vmatprep.subr.mxu0 0.0
    %1287 = vmatpush1.msra.mxu0 0.0
    %1288 = vmatprep.subr.mxu0 0.0
    %1289 = vmatpush1.msra.mxu0 0.0
    %1290 = vmatprep.subr.mxu0 0.0
    %1291 = vmatpush1.msra.mxu0 0.0
    %1292 = vmatprep.subr.mxu0 0.0
    %1293 = vmatpush1.msra.mxu0 0.0
    %1294 = vmatprep.subr.mxu0 0.0
    %1295 = vmatpush1.msra.mxu0 0.0
    %1296 = vmatprep.subr.mxu0 0.0
    %1297 = vmatpush1.msra.mxu0 0.0
    %1298 = vmatprep.subr.mxu0 0.0
    %1299 = vmatpush1.msra.mxu0 0.0
    %1300 = vmatprep.subr.mxu0 0.0
    %1301 = vmatpush1.msra.mxu0 0.0
    %1302 = vmatprep.subr.mxu0 0.0
    %1303 = vmatpush1.msra.mxu0 0.0
    %1304 = vmatprep.subr.mxu0 0.0
    %1305 = vmatpush1.msra.mxu0 0.0
    %1306 = vmatprep.subr.mxu0 0.0
    %1307 = vmatpush1.msra.mxu0 0.0
    %1308 = vmatprep.subr.mxu0 0.0
    %1309 = vmatpush1.msra.mxu0 0.0
    %1310 = vmatprep.subr.mxu0 0.0
    %1311 = vmatpush1.msra.mxu0 0.0
    %1312 = vmatprep.subr.mxu0 0.0
    %1313 = vmatpush1.msra.mxu0 0.0
    %1314 = vmatprep.subr.mxu0 0.0
    %1315 = vmatpush1.msra.mxu0 0.0
    %1316 = vmatprep.subr.mxu0 0.0
    %1317 = vmatpush1.msra.mxu0 0.0
    %1318 = vmatprep.mubr.f32.mxu0 0.0
    %1319 = vmatmul.mubr.f32.gmra.mrb[0].mxu0 %v1252
    %v1320 = vpop.f32.mrb[0].mxu0
    %v1321 = vadd.f32 0.0, %v1320
    %v1322 = vpop.f32.mrb[0].mxu0
    %1323 = vdwg.mxu0
    %v1324 = vld [vmem:[%s4 + $0x10] sm:$0xff]
    %v1326 = vsel %vm168, %v1245, 0
    %v1329 = vsel %vm168, %v1321, 0
    %1331 = vmatprep.subr.mxu0 0.0
    %1332 = vmatpush1.msra.mxu0 %v1324
    %1333 = vmatprep.subr.mxu0 0.0
    %1334 = vmatpush1.msra.mxu0 0.0
    %1335 = vmatprep.subr.mxu0 0.0
    %1336 = vmatpush1.msra.mxu0 0.0
    %1337 = vmatprep.subr.mxu0 0.0
    %1338 = vmatpush1.msra.mxu0 0.0
    %1339 = vmatprep.subr.mxu0 0.0
    %1340 = vmatpush1.msra.mxu0 0.0
    %1341 = vmatprep.subr.mxu0 0.0
    %1342 = vmatpush1.msra.mxu0 0.0
    %1343 = vmatprep.subr.mxu0 0.0
    %1344 = vmatpush1.msra.mxu0 0.0
    %1345 = vmatprep.subr.mxu0 0.0
    %1346 = vmatpush1.msra.mxu0 0.0
    %1347 = vmatprep.subr.mxu0 0.0
    %1348 = vmatpush1.msra.mxu0 0.0
    %1349 = vmatprep.subr.mxu0 0.0
    %1350 = vmatpush1.msra.mxu0 0.0
    %1351 = vmatprep.subr.mxu0 0.0
    %1352 = vmatpush1.msra.mxu0 0.0
    %1353 = vmatprep.subr.mxu0 0.0
    %1354 = vmatpush1.msra.mxu0 0.0
    %1355 = vmatprep.subr.mxu0 0.0
    %1356 = vmatpush1.msra.mxu0 0.0
    %1357 = vmatprep.subr.mxu0 0.0
    %1358 = vmatpush1.msra.mxu0 0.0
    %1359 = vmatprep.subr.mxu0 0.0
    %1360 = vmatpush1.msra.mxu0 0.0
    %1361 = vmatprep.subr.mxu0 0.0
    %1362 = vmatpush1.msra.mxu0 0.0
    %1363 = vmatprep.subr.mxu0 0.0
    %1364 = vmatpush1.msra.mxu0 0.0
    %1365 = vmatprep.subr.mxu0 0.0
    %1366 = vmatpush1.msra.mxu0 0.0
    %1367 = vmatprep.subr.mxu0 0.0
    %1368 = vmatpush1.msra.mxu0 0.0
    %1369 = vmatprep.subr.mxu0 0.0
    %1370 = vmatpush1.msra.mxu0 0.0
    %1371 = vmatprep.subr.mxu0 0.0
    %1372 = vmatpush1.msra.mxu0 0.0
    %1373 = vmatprep.subr.mxu0 0.0
    %1374 = vmatpush1.msra.mxu0 0.0
    %1375 = vmatprep.subr.mxu0 0.0
    %1376 = vmatpush1.msra.mxu0 0.0
    %1377 = vmatprep.subr.mxu0 0.0
    %1378 = vmatpush1.msra.mxu0 0.0
    %1379 = vmatprep.subr.mxu0 0.0
    %1380 = vmatpush1.msra.mxu0 0.0
    %1381 = vmatprep.subr.mxu0 0.0
    %1382 = vmatpush1.msra.mxu0 0.0
    %1383 = vmatprep.subr.mxu0 0.0
    %1384 = vmatpush1.msra.mxu0 0.0
    %1385 = vmatprep.subr.mxu0 0.0
    %1386 = vmatpush1.msra.mxu0 0.0
    %1387 = vmatprep.subr.mxu0 0.0
    %1388 = vmatpush1.msra.mxu0 0.0
    %1389 = vmatprep.subr.mxu0 0.0
    %1390 = vmatpush1.msra.mxu0 0.0
    %1391 = vmatprep.subr.mxu0 0.0
    %1392 = vmatpush1.msra.mxu0 0.0
    %1393 = vmatprep.subr.mxu0 0.0
    %1394 = vmatpush1.msra.mxu0 0.0
    %1395 = vmatprep.mubr.f32.mxu0 0.0
    %1396 = vmatmul.mubr.f32.gmra.mrb[0].mxu0 %v1326
    %v1397 = vpop.f32.mrb[0].mxu0
    %v1398 = vadd.f32 0.0, %v1397
    %v1399 = vpop.f32.mrb[0].mxu0
    %1400 = vmatprep.mubr.f32.mxu0 0.0
    %1401 = vmatmul.mubr.f32.gmra.mrb[0].mxu0 %v1329
    %v1402 = vpop.f32.mrb[0].mxu0
    %v1403 = vadd.f32 0.0, %v1402
    %v1404 = vpop.f32.mrb[0].mxu0
    %1405 = vdwg.mxu0
    %v1406 = vadd.f32 %v984, %v1398
    %v1407 = vadd.f32 %v989, %v1403
    %1408 = vrot.lane.b32.xlu0 %v157, 104
    %v1409 = vpop.permute.xlu0 %1408
    %1410 = vrot.lane.b32.xlu0 %v157, 72
    %v1411 = vpop.permute.xlu0 %1410
    %v1412 = vsel %vm168, %v1409, 0
    %v1414 = vsel %vm168, %v1411, 0
    %1416 = vmatprep.subr.mxu0 0.0
    %1417 = vmatpush1.xpose.msra.mxu0 %v1414
    %1418 = vmatprep.subr.mxu0 0.0
    %1419 = vmatpush1.xpose.msra.mxu0 0.0
    %1420 = vmatprep.subr.mxu0 0.0
    %1421 = vmatpush1.xpose.msra.mxu0 0.0
    %1422 = vmatprep.subr.mxu0 0.0
    %1423 = vmatpush1.xpose.msra.mxu0 0.0
    %1424 = vmatprep.subr.mxu0 0.0
    %1425 = vmatpush1.xpose.msra.mxu0 0.0
    %1426 = vmatprep.subr.mxu0 0.0
    %1427 = vmatpush1.xpose.msra.mxu0 0.0
    %1428 = vmatprep.subr.mxu0 0.0
    %1429 = vmatpush1.xpose.msra.mxu0 0.0
    %1430 = vmatprep.subr.mxu0 0.0
    %1431 = vmatpush1.xpose.msra.mxu0 0.0
    %1432 = vmatprep.subr.mxu0 0.0
    %1433 = vmatpush1.xpose.msra.mxu0 0.0
    %1434 = vmatprep.subr.mxu0 0.0
    %1435 = vmatpush1.xpose.msra.mxu0 0.0
    %1436 = vmatprep.subr.mxu0 0.0
    %1437 = vmatpush1.xpose.msra.mxu0 0.0
    %1438 = vmatprep.subr.mxu0 0.0
    %1439 = vmatpush1.xpose.msra.mxu0 0.0
    %1440 = vmatprep.subr.mxu0 0.0
    %1441 = vmatpush1.xpose.msra.mxu0 0.0
    %1442 = vmatprep.subr.mxu0 0.0
    %1443 = vmatpush1.xpose.msra.mxu0 0.0
    %1444 = vmatprep.subr.mxu0 0.0
    %1445 = vmatpush1.xpose.msra.mxu0 0.0
    %1446 = vmatprep.subr.mxu0 0.0
    %1447 = vmatpush1.xpose.msra.mxu0 0.0
    %1448 = vmatprep.subr.mxu0 0.0
    %1449 = vmatpush1.xpose.msra.mxu0 0.0
    %1450 = vmatprep.subr.mxu0 0.0
    %1451 = vmatpush1.xpose.msra.mxu0 0.0
    %1452 = vmatprep.subr.mxu0 0.0
    %1453 = vmatpush1.xpose.msra.mxu0 0.0
    %1454 = vmatprep.subr.mxu0 0.0
    %1455 = vmatpush1.xpose.msra.mxu0 0.0
    %1456 = vmatprep.subr.mxu0 0.0
    %1457 = vmatpush1.xpose.msra.mxu0 0.0
    %1458 = vmatprep.subr.mxu0 0.0
    %1459 = vmatpush1.xpose.msra.mxu0 0.0
    %1460 = vmatprep.subr.mxu0 0.0
    %1461 = vmatpush1.xpose.msra.mxu0 0.0
    %1462 = vmatprep.subr.mxu0 0.0
    %1463 = vmatpush1.xpose.msra.mxu0 0.0
    %1464 = vmatprep.subr.mxu0 0.0
    %1465 = vmatpush1.xpose.msra.mxu0 0.0
    %1466 = vmatprep.subr.mxu0 0.0
    %1467 = vmatpush1.xpose.msra.mxu0 0.0
    %1468 = vmatprep.subr.mxu0 0.0
    %1469 = vmatpush1.xpose.msra.mxu0 0.0
    %1470 = vmatprep.subr.mxu0 0.0
    %1471 = vmatpush1.xpose.msra.mxu0 0.0
    %1472 = vmatprep.subr.mxu0 0.0
    %1473 = vmatpush1.xpose.msra.mxu0 0.0
    %1474 = vmatprep.subr.mxu0 0.0
    %1475 = vmatpush1.xpose.msra.mxu0 0.0
    %1476 = vmatprep.subr.mxu0 0.0
    %1477 = vmatpush1.xpose.msra.mxu0 0.0
    %1478 = vmatprep.subr.mxu0 0.0
    %1479 = vmatpush1.xpose.msra.mxu0 0.0
    %1480 = vmatprep.mubr.f32.mxu0 0.0
    %1481 = vmatmul.mubr.f32.gmra.mrb[0].mxu0 %v1412
    %v1482 = vpop.f32.mrb[0].mxu0
    %v1483 = vadd.f32 0.0, %v1482
    %v1484 = vpop.f32.mrb[0].mxu0
    %1485 = vdwg.mxu0
    %1486 = vrot.lane.b32.xlu0 %v162, 104
    %v1487 = vpop.permute.xlu0 %1486
    %1488 = vrot.lane.b32.xlu0 %v162, 72
    %v1489 = vpop.permute.xlu0 %1488
    %v1490 = vsel %vm168, %v1487, 0
    %v1492 = vsel %vm168, %v1489, 0
    %1494 = vmatprep.subr.mxu0 0.0
    %1495 = vmatpush1.xpose.msra.mxu0 %v1492
    %1496 = vmatprep.subr.mxu0 0.0
    %1497 = vmatpush1.xpose.msra.mxu0 0.0
    %1498 = vmatprep.subr.mxu0 0.0
    %1499 = vmatpush1.xpose.msra.mxu0 0.0
    %1500 = vmatprep.subr.mxu0 0.0
    %1501 = vmatpush1.xpose.msra.mxu0 0.0
    %1502 = vmatprep.subr.mxu0 0.0
    %1503 = vmatpush1.xpose.msra.mxu0 0.0
    %1504 = vmatprep.subr.mxu0 0.0
    %1505 = vmatpush1.xpose.msra.mxu0 0.0
    %1506 = vmatprep.subr.mxu0 0.0
    %1507 = vmatpush1.xpose.msra.mxu0 0.0
    %1508 = vmatprep.subr.mxu0 0.0
    %1509 = vmatpush1.xpose.msra.mxu0 0.0
    %1510 = vmatprep.subr.mxu0 0.0
    %1511 = vmatpush1.xpose.msra.mxu0 0.0
    %1512 = vmatprep.subr.mxu0 0.0
    %1513 = vmatpush1.xpose.msra.mxu0 0.0
    %1514 = vmatprep.subr.mxu0 0.0
    %1515 = vmatpush1.xpose.msra.mxu0 0.0
    %1516 = vmatprep.subr.mxu0 0.0
    %1517 = vmatpush1.xpose.msra.mxu0 0.0
    %1518 = vmatprep.subr.mxu0 0.0
    %1519 = vmatpush1.xpose.msra.mxu0 0.0
    %1520 = vmatprep.subr.mxu0 0.0
    %1521 = vmatpush1.xpose.msra.mxu0 0.0
    %1522 = vmatprep.subr.mxu0 0.0
    %1523 = vmatpush1.xpose.msra.mxu0 0.0
    %1524 = vmatprep.subr.mxu0 0.0
    %1525 = vmatpush1.xpose.msra.mxu0 0.0
    %1526 = vmatprep.subr.mxu0 0.0
    %1527 = vmatpush1.xpose.msra.mxu0 0.0
    %1528 = vmatprep.subr.mxu0 0.0
    %1529 = vmatpush1.xpose.msra.mxu0 0.0
    %1530 = vmatprep.subr.mxu0 0.0
    %1531 = vmatpush1.xpose.msra.mxu0 0.0
    %1532 = vmatprep.subr.mxu0 0.0
    %1533 = vmatpush1.xpose.msra.mxu0 0.0
    %1534 = vmatprep.subr.mxu0 0.0
    %1535 = vmatpush1.xpose.msra.mxu0 0.0
    %1536 = vmatprep.subr.mxu0 0.0
    %1537 = vmatpush1.xpose.msra.mxu0 0.0
    %1538 = vmatprep.subr.mxu0 0.0
    %1539 = vmatpush1.xpose.msra.mxu0 0.0
    %1540 = vmatprep.subr.mxu0 0.0
    %1541 = vmatpush1.xpose.msra.mxu0 0.0
    %1542 = vmatprep.subr.mxu0 0.0
    %1543 = vmatpush1.xpose.msra.mxu0 0.0
    %1544 = vmatprep.subr.mxu0 0.0
    %1545 = vmatpush1.xpose.msra.mxu0 0.0
    %1546 = vmatprep.subr.mxu0 0.0
    %1547 = vmatpush1.xpose.msra.mxu0 0.0
    %1548 = vmatprep.subr.mxu0 0.0
    %1549 = vmatpush1.xpose.msra.mxu0 0.0
    %1550 = vmatprep.subr.mxu0 0.0
    %1551 = vmatpush1.xpose.msra.mxu0 0.0
    %1552 = vmatprep.subr.mxu0 0.0
    %1553 = vmatpush1.xpose.msra.mxu0 0.0
    %1554 = vmatprep.subr.mxu0 0.0
    %1555 = vmatpush1.xpose.msra.mxu0 0.0
    %1556 = vmatprep.subr.mxu0 0.0
    %1557 = vmatpush1.xpose.msra.mxu0 0.0
    %1558 = vmatprep.mubr.f32.mxu0 0.0
    %1559 = vmatmul.mubr.f32.gmra.mrb[0].mxu0 %v1490
    %v1560 = vpop.f32.mrb[0].mxu0
    %v1561 = vadd.f32 0.0, %v1560
    %v1562 = vpop.f32.mrb[0].mxu0
    %1563 = vdwg.mxu0
    %v1564 = vmul.f32 %v1483, 0.35355338
    %v1565 = vmul.f32 %v1561, 0.35355338
    %v1566 = vsel %vm168, %v1564, -inf
    %1567 = vmax.xlane.f32.xlu0 %v1566
    %v1568 = vpop.xlane.xlu0 %1567
    %v1569 = vsel %vm168, %v1565, -inf
    %1570 = vmax.xlane.f32.xlu0 %v1569
    %v1571 = vpop.xlane.xlu0 %1570
    %v1572 = vsub.f32 %v1564, %v1568
    %v1573 = vsub.f32 %v1565, %v1571
    %v1574 = vmul.f32 %v1572, 1.442695
    %v1575 = vpow.pop %v1574
    %v1576 = vmul.f32 %v1573, 1.442695
    %v1577 = vpow.pop %v1576
    %v1578 = vsel %vm168, %v1575, 0.0
    %1579 = vadd.xlane.f32.xlu0 %v1578
    %v1580 = vpop.xlane.xlu0 %1579
    %v1581 = vsel %vm168, %v1577, 0.0
    %1582 = vadd.xlane.f32.xlu0 %v1581
    %v1583 = vpop.xlane.xlu0 %1582
    %v1584 = vrcp.pop %v1580
    %v1585 = vrcp.pop %v1583
    %v1586 = vmul.f32 %v1575, %v1584
    %v1587 = vmul.f32 %v1577, %v1585
    %1588 = vrot.lane.b32.xlu0 %v157, 40
    %v1589 = vpop.permute.xlu0 %1588
    %v1592 = vsel %vm168, %v1586, 0
    %1594 = vmatprep.subr.mxu0 0.0
    %1595 = vmatpush1.msra.mxu0 %v1589
    %1596 = vmatprep.subr.mxu0 0.0
    %1597 = vmatpush1.msra.mxu0 0.0
    %1598 = vmatprep.subr.mxu0 0.0
    %1599 = vmatpush1.msra.mxu0 0.0
    %1600 = vmatprep.subr.mxu0 0.0
    %1601 = vmatpush1.msra.mxu0 0.0
    %1602 = vmatprep.subr.mxu0 0.0
    %1603 = vmatpush1.msra.mxu0 0.0
    %1604 = vmatprep.subr.mxu0 0.0
    %1605 = vmatpush1.msra.mxu0 0.0
    %1606 = vmatprep.subr.mxu0 0.0
    %1607 = vmatpush1.msra.mxu0 0.0
    %1608 = vmatprep.subr.mxu0 0.0
    %1609 = vmatpush1.msra.mxu0 0.0
    %1610 = vmatprep.subr.mxu0 0.0
    %1611 = vmatpush1.msra.mxu0 0.0
    %1612 = vmatprep.subr.mxu0 0.0
    %1613 = vmatpush1.msra.mxu0 0.0
    %1614 = vmatprep.subr.mxu0 0.0
    %1615 = vmatpush1.msra.mxu0 0.0
    %1616 = vmatprep.subr.mxu0 0.0
    %1617 = vmatpush1.msra.mxu0 0.0
    %1618 = vmatprep.subr.mxu0 0.0
    %1619 = vmatpush1.msra.mxu0 0.0
    %1620 = vmatprep.subr.mxu0 0.0
    %1621 = vmatpush1.msra.mxu0 0.0
    %1622 = vmatprep.subr.mxu0 0.0
    %1623 = vmatpush1.msra.mxu0 0.0
    %1624 = vmatprep.subr.mxu0 0.0
    %1625 = vmatpush1.msra.mxu0 0.0
    %1626 = vmatprep.subr.mxu0 0.0
    %1627 = vmatpush1.msra.mxu0 0.0
    %1628 = vmatprep.subr.mxu0 0.0
    %1629 = vmatpush1.msra.mxu0 0.0
    %1630 = vmatprep.subr.mxu0 0.0
    %1631 = vmatpush1.msra.mxu0 0.0
    %1632 = vmatprep.subr.mxu0 0.0
    %1633 = vmatpush1.msra.mxu0 0.0
    %1634 = vmatprep.subr.mxu0 0.0
    %1635 = vmatpush1.msra.mxu0 0.0
    %1636 = vmatprep.subr.mxu0 0.0
    %1637 = vmatpush1.msra.mxu0 0.0
    %1638 = vmatprep.subr.mxu0 0.0
    %1639 = vmatpush1.msra.mxu0 0.0
    %1640 = vmatprep.subr.mxu0 0.0
    %1641 = vmatpush1.msra.mxu0 0.0
    %1642 = vmatprep.subr.mxu0 0.0
    %1643 = vmatpush1.msra.mxu0 0.0
    %1644 = vmatprep.subr.mxu0 0.0
    %1645 = vmatpush1.msra.mxu0 0.0
    %1646 = vmatprep.subr.mxu0 0.0
    %1647 = vmatpush1.msra.mxu0 0.0
    %1648 = vmatprep.subr.mxu0 0.0
    %1649 = vmatpush1.msra.mxu0 0.0
    %1650 = vmatprep.subr.mxu0 0.0
    %1651 = vmatpush1.msra.mxu0 0.0
    %1652 = vmatprep.subr.mxu0 0.0
    %1653 = vmatpush1.msra.mxu0 0.0
    %1654 = vmatprep.subr.mxu0 0.0
    %1655 = vmatpush1.msra.mxu0 0.0
    %1656 = vmatprep.subr.mxu0 0.0
    %1657 = vmatpush1.msra.mxu0 0.0
    %1658 = vmatprep.mubr.f32.mxu0 0.0
    %1659 = vmatmul.mubr.f32.gmra.mrb[0].mxu0 %v1592
    %v1660 = vpop.f32.mrb[0].mxu0
    %v1661 = vadd.f32 0.0, %v1660
    %v1662 = vpop.f32.mrb[0].mxu0
    %1663 = vdwg.mxu0
    %1664 = vrot.lane.b32.xlu0 %v162, 40
    %v1665 = vpop.permute.xlu0 %1664
    %v1668 = vsel %vm168, %v1587, 0
    %1670 = vmatprep.subr.mxu0 0.0
    %1671 = vmatpush1.msra.mxu0 %v1665
    %1672 = vmatprep.subr.mxu0 0.0
    %1673 = vmatpush1.msra.mxu0 0.0
    %1674 = vmatprep.subr.mxu0 0.0
    %1675 = vmatpush1.msra.mxu0 0.0
    %1676 = vmatprep.subr.mxu0 0.0
    %1677 = vmatpush1.msra.mxu0 0.0
    %1678 = vmatprep.subr.mxu0 0.0
    %1679 = vmatpush1.msra.mxu0 0.0
    %1680 = vmatprep.subr.mxu0 0.0
    %1681 = vmatpush1.msra.mxu0 0.0
    %1682 = vmatprep.subr.mxu0 0.0
    %1683 = vmatpush1.msra.mxu0 0.0
    %1684 = vmatprep.subr.mxu0 0.0
    %1685 = vmatpush1.msra.mxu0 0.0
    %1686 = vmatprep.subr.mxu0 0.0
    %1687 = vmatpush1.msra.mxu0 0.0
    %1688 = vmatprep.subr.mxu0 0.0
    %1689 = vmatpush1.msra.mxu0 0.0
    %1690 = vmatprep.subr.mxu0 0.0
    %1691 = vmatpush1.msra.mxu0 0.0
    %1692 = vmatprep.subr.mxu0 0.0
    %1693 = vmatpush1.msra.mxu0 0.0
    %1694 = vmatprep.subr.mxu0 0.0
    %1695 = vmatpush1.msra.mxu0 0.0
    %1696 = vmatprep.subr.mxu0 0.0
    %1697 = vmatpush1.msra.mxu0 0.0
    %1698 = vmatprep.subr.mxu0 0.0
    %1699 = vmatpush1.msra.mxu0 0.0
    %1700 = vmatprep.subr.mxu0 0.0
    %1701 = vmatpush1.msra.mxu0 0.0
    %1702 = vmatprep.subr.mxu0 0.0
    %1703 = vmatpush1.msra.mxu0 0.0
    %1704 = vmatprep.subr.mxu0 0.0
    %1705 = vmatpush1.msra.mxu0 0.0
    %1706 = vmatprep.subr.mxu0 0.0
    %1707 = vmatpush1.msra.mxu0 0.0
    %1708 = vmatprep.subr.mxu0 0.0
    %1709 = vmatpush1.msra.mxu0 0.0
    %1710 = vmatprep.subr.mxu0 0.0
    %1711 = vmatpush1.msra.mxu0 0.0
    %1712 = vmatprep.subr.mxu0 0.0
    %1713 = vmatpush1.msra.mxu0 0.0
    %1714 = vmatprep.subr.mxu0 0.0
    %1715 = vmatpush1.msra.mxu0 0.0
    %1716 = vmatprep.subr.mxu0 0.0
    %1717 = vmatpush1.msra.mxu0 0.0
    %1718 = vmatprep.subr.mxu0 0.0
    %1719 = vmatpush1.msra.mxu0 0.0
    %1720 = vmatprep.subr.mxu0 0.0
    %1721 = vmatpush1.msra.mxu0 0.0
    %1722 = vmatprep.subr.mxu0 0.0
    %1723 = vmatpush1.msra.mxu0 0.0
    %1724 = vmatprep.subr.mxu0 0.0
    %1725 = vmatpush1.msra.mxu0 0.0
    %1726 = vmatprep.subr.mxu0 0.0
    %1727 = vmatpush1.msra.mxu0 0.0
    %1728 = vmatprep.subr.mxu0 0.0
    %1729 = vmatpush1.msra.mxu0 0.0
    %1730 = vmatprep.subr.mxu0 0.0
    %1731 = vmatpush1.msra.mxu0 0.0
    %1732 = vmatprep.subr.mxu0 0.0
    %1733 = vmatpush1.msra.mxu0 0.0
    %1734 = vmatprep.mubr.f32.mxu0 0.0
    %1735 = vmatmul.mubr.f32.gmra.mrb[0].mxu0 %v1668
    %v1736 = vpop.f32.mrb[0].mxu0
    %v1737 = vadd.f32 0.0, %v1736
    %v1738 = vpop.f32.mrb[0].mxu0
    %1739 = vdwg.mxu0
    %v1740 = vld [vmem:[%s4 + $0x18] sm:$0xff]
    %v1742 = vsel %vm168, %v1661, 0
    %v1745 = vsel %vm168, %v1737, 0
    %1747 = vmatprep.subr.mxu0 0.0
    %1748 = vmatpush1.msra.mxu0 %v1740
    %1749 = vmatprep.subr.mxu0 0.0
    %1750 = vmatpush1.msra.mxu0 0.0
    %1751 = vmatprep.subr.mxu0 0.0
    %1752 = vmatpush1.msra.mxu0 0.0
    %1753 = vmatprep.subr.mxu0 0.0
    %1754 = vmatpush1.msra.mxu0 0.0
    %1755 = vmatprep.subr.mxu0 0.0
    %1756 = vmatpush1.msra.mxu0 0.0
    %1757 = vmatprep.subr.mxu0 0.0
    %1758 = vmatpush1.msra.mxu0 0.0
    %1759 = vmatprep.subr.mxu0 0.0
    %1760 = vmatpush1.msra.mxu0 0.0
    %1761 = vmatprep.subr.mxu0 0.0
    %1762 = vmatpush1.msra.mxu0 0.0
    %1763 = vmatprep.subr.mxu0 0.0
    %1764 = vmatpush1.msra.mxu0 0.0
    %1765 = vmatprep.subr.mxu0 0.0
    %1766 = vmatpush1.msra.mxu0 0.0
    %1767 = vmatprep.subr.mxu0 0.0
    %1768 = vmatpush1.msra.mxu0 0.0
    %1769 = vmatprep.subr.mxu0 0.0
    %1770 = vmatpush1.msra.mxu0 0.0
    %1771 = vmatprep.subr.mxu0 0.0
    %1772 = vmatpush1.msra.mxu0 0.0
    %1773 = vmatprep.subr.mxu0 0.0
    %1774 = vmatpush1.msra.mxu0 0.0
    %1775 = vmatprep.subr.mxu0 0.0
    %1776 = vmatpush1.msra.mxu0 0.0
    %1777 = vmatprep.subr.mxu0 0.0
    %1778 = vmatpush1.msra.mxu0 0.0
    %1779 = vmatprep.subr.mxu0 0.0
    %1780 = vmatpush1.msra.mxu0 0.0
    %1781 = vmatprep.subr.mxu0 0.0
    %1782 = vmatpush1.msra.mxu0 0.0
    %1783 = vmatprep.subr.mxu0 0.0
    %1784 = vmatpush1.msra.mxu0 0.0
    %1785 = vmatprep.subr.mxu0 0.0
    %1786 = vmatpush1.msra.mxu0 0.0
    %1787 = vmatprep.subr.mxu0 0.0
    %1788 = vmatpush1.msra.mxu0 0.0
    %1789 = vmatprep.subr.mxu0 0.0
    %1790 = vmatpush1.msra.mxu0 0.0
    %1791 = vmatprep.subr.mxu0 0.0
    %1792 = vmatpush1.msra.mxu0 0.0
    %1793 = vmatprep.subr.mxu0 0.0
    %1794 = vmatpush1.msra.mxu0 0.0
    %1795 = vmatprep.subr.mxu0 0.0
    %1796 = vmatpush1.msra.mxu0 0.0
    %1797 = vmatprep.subr.mxu0 0.0
    %1798 = vmatpush1.msra.mxu0 0.0
    %1799 = vmatprep.subr.mxu0 0.0
    %1800 = vmatpush1.msra.mxu0 0.0
    %1801 = vmatprep.subr.mxu0 0.0
    %1802 = vmatpush1.msra.mxu0 0.0
    %1803 = vmatprep.subr.mxu0 0.0
    %1804 = vmatpush1.msra.mxu0 0.0
    %1805 = vmatprep.subr.mxu0 0.0
    %1806 = vmatpush1.msra.mxu0 0.0
    %1807 = vmatprep.subr.mxu0 0.0
    %1808 = vmatpush1.msra.mxu0 0.0
    %1809 = vmatprep.subr.mxu0 0.0
    %1810 = vmatpush1.msra.mxu0 0.0
    %1811 = vmatprep.mubr.f32.mxu0 0.0
    %1812 = vmatmul.mubr.f32.gmra.mrb[0].mxu0 %v1742
    %v1813 = vpop.f32.mrb[0].mxu0
    %v1814 = vadd.f32 0.0, %v1813
    %v1815 = vpop.f32.mrb[0].mxu0
    %1816 = vmatprep.mubr.f32.mxu0 0.0
    %1817 = vmatmul.mubr.f32.gmra.mrb[0].mxu0 %v1745
    %v1818 = vpop.f32.mrb[0].mxu0
    %v1819 = vadd.f32 0.0, %v1818
    %v1820 = vpop.f32.mrb[0].mxu0
    %1821 = vdwg.mxu0
    %v1822 = vadd.f32 %v1406, %v1814
    %v1823 = vadd.f32 %v1407, %v1819
    %v1824 = vlaneseq
    %v1825 = vshrl.u32 %v1824, 7
    %v1826 = vsub.s32 4, %v1825
    %v1827 = vrot.slane %v32, %v1826
    %v1828 = vadd.f32 %v1822, %v1827
    %v1829 = vadd.f32 %v1823, %v1827
    %v1830 = vadd.f32 %v30, %v1828
    %v1831 = vadd.f32 %v31, %v1829
    %v1832 = vsel %vm33, %v1830, 0.0
    %1833 = vadd.xlane.f32.xlu0 %v1832
    %v1834 = vpop.xlane.xlu0 %1833
    %v1835 = vsel %vm33, %v1831, 0.0
    %1836 = vadd.xlane.f32.xlu0 %v1835
    %v1837 = vpop.xlane.xlu0 %1836
    %v1838 = vmul.f32 %v1834, %v40
    %v1839 = vmul.f32 %v1837, %v40
    %v1840 = vsub.f32 %v1830, %v1838
    %v1841 = vsub.f32 %v1831, %v1839
    %v1842 = vmul.f32 %v1840, %v1840
    %v1843 = vmul.f32 %v1841, %v1841
    %v1844 = vsel %vm33, %v1842, 0.0
    %1845 = vadd.xlane.f32.xlu0 %v1844
    %v1846 = vpop.xlane.xlu0 %1845
    %v1847 = vsel %vm33, %v1843, 0.0
    %1848 = vadd.xlane.f32.xlu0 %v1847
    %v1849 = vpop.xlane.xlu0 %1848
    %v1850 = vmul.f32 %v1846, %v40
    %v1851 = vmul.f32 %v1849, %v40
    %v1852 = vadd.f32 %v1850, 1e-05
    %v1853 = vadd.f32 %v1851, 1e-05
    %v1854 = vrsqrt.pop %v1852
    %v1855 = vrsqrt.pop %v1853
    %v1856 = vmul.f32 %v1840, %v1854
    %v1857 = vmul.f32 %v1841, %v1855
    %v1858 = vlaneseq
    %v1859 = vshrl.u32 %v1858, 7
    %v1860 = vsub.s32 2, %v1859
    %v1861 = vrot.slane %v32, %v1860
    %v1862 = vmul.f32 %v1856, %v1861
    %v1863 = vmul.f32 %v1857, %v1861
    %v1864 = vlaneseq
    %v1865 = vshrl.u32 %v1864, 7
    %v1866 = vsub.s32 3, %v1865
    %v1867 = vrot.slane %v32, %v1866
    %v1868 = vadd.f32 %v1862, %v1867
    %v1869 = vadd.f32 %v1863, %v1867
    %v1870 = vld [vmem:[%s5] sm:$0xff]
    %v1871 = vld [vmem:[%s5 + $0x8] sm:$0xff]
    %v1872 = vld [vmem:[%s5 + $0x10] sm:$0xff]
    %v1873 = vld [vmem:[%s5 + $0x18] sm:$0xff]
    %v1874 = vld [vmem:[%s6] sm:$0x1]
    %v1876 = vlaneseq
    %v1877 = vshrl.u32 %v1876, 7
    %v1878 = vsub.s32 0, %v1877
    %v1879 = vrot.slane %v1874, %v1878
    %v1882 = vsel %vm33, %v1868, 0
    %v1885 = vsel %vm33, %v1869, 0
    %1887 = vmatprep.subr.mxu0 0.0
    %1888 = vmatpush1.msra.mxu0 %v1870
    %1889 = vmatprep.subr.mxu0 0.0
    %1890 = vmatpush1.msra.mxu0 %v1871
    %1891 = vmatprep.subr.mxu0 0.0
    %1892 = vmatpush1.msra.mxu0 %v1872
    %1893 = vmatprep.subr.mxu0 0.0
    %1894 = vmatpush1.msra.mxu0 %v1873
    %1895 = vmatprep.subr.mxu0 0.0
    %1896 = vmatpush1.msra.mxu0 0.0
    %1897 = vmatprep.subr.mxu0 0.0
    %1898 = vmatpush1.msra.mxu0 0.0
    %1899 = vmatprep.subr.mxu0 0.0
    %1900 = vmatpush1.msra.mxu0 0.0
    %1901 = vmatprep.subr.mxu0 0.0
    %1902 = vmatpush1.msra.mxu0 0.0
    %1903 = vmatprep.subr.mxu0 0.0
    %1904 = vmatpush1.msra.mxu0 0.0
    %1905 = vmatprep.subr.mxu0 0.0
    %1906 = vmatpush1.msra.mxu0 0.0
    %1907 = vmatprep.subr.mxu0 0.0
    %1908 = vmatpush1.msra.mxu0 0.0
    %1909 = vmatprep.subr.mxu0 0.0
    %1910 = vmatpush1.msra.mxu0 0.0
    %1911 = vmatprep.subr.mxu0 0.0
    %1912 = vmatpush1.msra.mxu0 0.0
    %1913 = vmatprep.subr.mxu0 0.0
    %1914 = vmatpush1.msra.mxu0 0.0
    %1915 = vmatprep.subr.mxu0 0.0
    %1916 = vmatpush1.msra.mxu0 0.0
    %1917 = vmatprep.subr.mxu0 0.0
    %1918 = vmatpush1.msra.mxu0 0.0
    %1919 = vmatprep.subr.mxu0 0.0
    %1920 = vmatpush1.msra.mxu0 0.0
    %1921 = vmatprep.subr.mxu0 0.0
    %1922 = vmatpush1.msra.mxu0 0.0
    %1923 = vmatprep.subr.mxu0 0.0
    %1924 = vmatpush1.msra.mxu0 0.0
    %1925 = vmatprep.subr.mxu0 0.0
    %1926 = vmatpush1.msra.mxu0 0.0
    %1927 = vmatprep.subr.mxu0 0.0
    %1928 = vmatpush1.msra.mxu0 0.0
    %1929 = vmatprep.subr.mxu0 0.0
    %1930 = vmatpush1.msra.mxu0 0.0
    %1931 = vmatprep.subr.mxu0 0.0
    %1932 = vmatpush1.msra.mxu0 0.0
    %1933 = vmatprep.subr.mxu0 0.0
    %1934 = vmatpush1.msra.mxu0 0.0
    %1935 = vmatprep.subr.mxu0 0.0
    %1936 = vmatpush1.msra.mxu0 0.0
    %1937 = vmatprep.subr.mxu0 0.0
    %1938 = vmatpush1.msra.mxu0 0.0
    %1939 = vmatprep.subr.mxu0 0.0
    %1940 = vmatpush1.msra.mxu0 0.0
    %1941 = vmatprep.subr.mxu0 0.0
    %1942 = vmatpush1.msra.mxu0 0.0
    %1943 = vmatprep.subr.mxu0 0.0
    %1944 = vmatpush1.msra.mxu0 0.0
    %1945 = vmatprep.subr.mxu0 0.0
    %1946 = vmatpush1.msra.mxu0 0.0
    %1947 = vmatprep.subr.mxu0 0.0
    %1948 = vmatpush1.msra.mxu0 0.0
    %1949 = vmatprep.subr.mxu0 0.0
    %1950 = vmatpush1.msra.mxu0 0.0
    %1951 = vmatprep.mubr.f32.mxu0 0.0
    %1952 = vmatmul.mubr.f32.gmra.mrb[0].mxu0 %v1882
    %v1953 = vpop.f32.mrb[0].mxu0
    %v1954 = vadd.f32 %v1879, %v1953
    %v1955 = vpop.f32.mrb[0].mxu0
    %1956 = vmatprep.mubr.f32.mxu0 0.0
    %1957 = vmatmul.mubr.f32.gmra.mrb[0].mxu0 %v1885
    %v1958 = vpop.f32.mrb[0].mxu0
    %v1959 = vadd.f32 %v1879, %v1958
    %v1960 = vpop.f32.mrb[0].mxu0
    %1961 = vdwg.mxu0
    %vm1962 = vcmp.gt.f32.partialorder %v1954, 0.0
    %vm1963 = vcmp.gt.f32.partialorder %v1959, 0.0
    %v1964 = vmul.f32 %v1954, 0.3
    %v1965 = vmul.f32 %v1959, 0.3
    %v1966 = vsel %vm1962, %v1954, %v1964
    %v1967 = vsel %vm1963, %v1959, %v1965
    %v1968 = vld [vmem:[%s7] sm:$0xff]
    %v1969 = vld [vmem:[%s7 + $0x8] sm:$0xff]
    %v1970 = vld [vmem:[%s7 + $0x10] sm:$0xff]
    %v1971 = vld [vmem:[%s7 + $0x18] sm:$0xff]
    %v1972 = vld [vmem:[%s7 + $0x20] sm:$0xff]
    %v1973 = vld [vmem:[%s7 + $0x28] sm:$0xff]
    %v1974 = vld [vmem:[%s7 + $0x30] sm:$0xff]
    %v1975 = vld [vmem:[%s7 + $0x38] sm:$0xff]
    %v1976 = vld [vmem:[%s7 + $0x40] sm:$0xff]
    %v1977 = vld [vmem:[%s7 + $0x48] sm:$0xff]
    %v1978 = vld [vmem:[%s7 + $0x50] sm:$0xff]
    %v1979 = vld [vmem:[%s7 + $0x58] sm:$0xff]
    %v1980 = vld [vmem:[%s7 + $0x60] sm:$0xff]
    %v1981 = vld [vmem:[%s7 + $0x68] sm:$0xff]
    %v1982 = vld [vmem:[%s7 + $0x70] sm:$0xff]
    %v1983 = vld [vmem:[%s7 + $0x78] sm:$0xff]
    %v1984 = vlaneseq
    %v1985 = vshrl.u32 %v1984, 7
    %v1986 = vsub.s32 5, %v1985
    %v1987 = vrot.slane %v32, %v1986
    %1988 = vmatprep.subr.mxu0 0.0
    %1989 = vmatpush1.msra.mxu0 %v1968
    %1990 = vmatprep.subr.mxu0 0.0
    %1991 = vmatpush1.msra.mxu0 %v1969
    %1992 = vmatprep.subr.mxu0 0.0
    %1993 = vmatpush1.msra.mxu0 %v1970
    %1994 = vmatprep.subr.mxu0 0.0
    %1995 = vmatpush1.msra.mxu0 %v1971
    %1996 = vmatprep.subr.mxu0 0.0
    %1997 = vmatpush1.msra.mxu0 %v1972
    %1998 = vmatprep.subr.mxu0 0.0
    %1999 = vmatpush1.msra.mxu0 %v1973
    %2000 = vmatprep.subr.mxu0 0.0
    %2001 = vmatpush1.msra.mxu0 %v1974
    %2002 = vmatprep.subr.mxu0 0.0
    %2003 = vmatpush1.msra.mxu0 %v1975
    %2004 = vmatprep.subr.mxu0 0.0
    %2005 = vmatpush1.msra.mxu0 %v1976
    %2006 = vmatprep.subr.mxu0 0.0
    %2007 = vmatpush1.msra.mxu0 %v1977
    %2008 = vmatprep.subr.mxu0 0.0
    %2009 = vmatpush1.msra.mxu0 %v1978
    %2010 = vmatprep.subr.mxu0 0.0
    %2011 = vmatpush1.msra.mxu0 %v1979
    %2012 = vmatprep.subr.mxu0 0.0
    %2013 = vmatpush1.msra.mxu0 %v1980
    %2014 = vmatprep.subr.mxu0 0.0
    %2015 = vmatpush1.msra.mxu0 %v1981
    %2016 = vmatprep.subr.mxu0 0.0
    %2017 = vmatpush1.msra.mxu0 %v1982
    %2018 = vmatprep.subr.mxu0 0.0
    %2019 = vmatpush1.msra.mxu0 %v1983
    %2020 = vmatprep.subr.mxu0 0.0
    %2021 = vmatpush1.msra.mxu0 0.0
    %2022 = vmatprep.subr.mxu0 0.0
    %2023 = vmatpush1.msra.mxu0 0.0
    %2024 = vmatprep.subr.mxu0 0.0
    %2025 = vmatpush1.msra.mxu0 0.0
    %2026 = vmatprep.subr.mxu0 0.0
    %2027 = vmatpush1.msra.mxu0 0.0
    %2028 = vmatprep.subr.mxu0 0.0
    %2029 = vmatpush1.msra.mxu0 0.0
    %2030 = vmatprep.subr.mxu0 0.0
    %2031 = vmatpush1.msra.mxu0 0.0
    %2032 = vmatprep.subr.mxu0 0.0
    %2033 = vmatpush1.msra.mxu0 0.0
    %2034 = vmatprep.subr.mxu0 0.0
    %2035 = vmatpush1.msra.mxu0 0.0
    %2036 = vmatprep.subr.mxu0 0.0
    %2037 = vmatpush1.msra.mxu0 0.0
    %2038 = vmatprep.subr.mxu0 0.0
    %2039 = vmatpush1.msra.mxu0 0.0
    %2040 = vmatprep.subr.mxu0 0.0
    %2041 = vmatpush1.msra.mxu0 0.0
    %2042 = vmatprep.subr.mxu0 0.0
    %2043 = vmatpush1.msra.mxu0 0.0
    %2044 = vmatprep.subr.mxu0 0.0
    %2045 = vmatpush1.msra.mxu0 0.0
    %2046 = vmatprep.subr.mxu0 0.0
    %2047 = vmatpush1.msra.mxu0 0.0
    %2048 = vmatprep.subr.mxu0 0.0
    %2049 = vmatpush1.msra.mxu0 0.0
    %2050 = vmatprep.subr.mxu0 0.0
    %2051 = vmatpush1.msra.mxu0 0.0
    %2052 = vmatprep.mubr.f32.mxu0 0.0
    %2053 = vmatmul.mubr.f32.gmra.mrb[0].mxu0 %v1966
    %v2054 = vpop.f32.mrb[0].mxu0
    %v2055 = vadd.f32 %v1987, %v2054
    %v2056 = vpop.f32.mrb[0].mxu0
    %2057 = vmatprep.mubr.f32.mxu0 0.0
    %2058 = vmatmul.mubr.f32.gmra.mrb[0].mxu0 %v1967
    %v2059 = vpop.f32.mrb[0].mxu0
    %v2060 = vadd.f32 %v1987, %v2059
    %v2061 = vpop.f32.mrb[0].mxu0
    %2062 = vdwg.mxu0
    %v2063 = vadd.f32 %v1830, %v2055
    %v2064 = vadd.f32 %v1831, %v2060
    %2065 = vst.msk [vmem:[#allocation2] sm:$0xff] %vm33, %v2063
    %2066 = vst.msk [vmem:[#allocation2 + $0x8] sm:$0xff] %vm33, %v2064
    // Predicated region
    $region34: #{tpu_custom_call.1} parent=1 // pred_check
      _
    $region35: #{tpu_custom_call.1} parent=1 // pred_check_branch
      %2068 = sbr.rel (0) target = $region37
    $region36: #{tpu_custom_call.1} parent=1 // pred_region
      %s2070 = ssub.s32 256, 256
      %2071 = vsyncadd [#allocation3], %s2070
      %s2072 = sshll.u32 [#allocation2], 4
      %s2073 = int_to_ptr.vmem [resolvable:$true] %s2072
      %2078 = dma.vmem_to_hbm [thread:$0]  %s2073, 256, %s8, [#allocation3], 128, 128, 8
    $region37: #{tpu_custom_call.1} parent=1 // pred_fallthru
      _
    // Predicated region
    $region38: #{tpu_custom_call.1} parent=1 // pred_check
      _
    $region39: #{tpu_custom_call.1} parent=1 // pred_check_branch
      %2080 = sbr.rel (0) target = $region41
    $region40: #{tpu_custom_call.1} parent=1 // pred_region
      %2081 = dma.done [#allocation3], 256
    $region41: #{tpu_custom_call.1} parent=1 // pred_fallthru
      _
    %2082 = vsyncpa [#allocation3], 1

</llo_original>
